<compile_context>
chip_gen: v6e
topology: v6e:2x2x1
jax: 0.10.0
libtpu: 0.0.40
codegen_flags: <defaults>
</compile_context>

<pallas_src>
import jax
import jax.numpy as jnp
from jax.experimental import pallas as pl
from jax.experimental.pallas import tpu as pltpu


def gat_kernel(self_ref, ns_ref, w_ref, b_ref, out_ref):
    sv = self_ref[...].astype(jnp.float32)[:, None, :]   # (TB, 1, D)
    ns = ns_ref[...].astype(jnp.float32)                 # (TB, K, D), K = N+1

    # --- attention scores: s[b, 0, k] = sum_d sv[b, 0, d] * ns[b, k, d] ---
    s = jnp.einsum("bqd,bkd->bqk", sv, ns,
                   preferred_element_type=jnp.float32)   # (TB, 1, K)

    # --- numerically stable softmax over last dim (EUP reciprocal) ---
    m = jnp.max(s, axis=-1, keepdims=True)
    p = jnp.exp(s - m)
    attn = p * pl.reciprocal(jnp.sum(p, axis=-1, keepdims=True), approx=True)

    # --- context[b, d] = sum_k attn[b, 0, k] * ns[b, k, d] ---
    ctx = jnp.einsum("bqk,bkd->bqd", attn, ns,
                     preferred_element_type=jnp.float32)  # (TB, 1, D)
    ctx = ctx[:, 0, :]                                    # (TB, D)

    # --- fc + ReLU (MXU matmul, f32 accumulation) ---
    out = jnp.dot(ctx, w_ref[...], preferred_element_type=jnp.float32)
    out = out + b_ref[...]                                # (TB, O) + (1, O)
    out_ref[...] = jnp.maximum(out, 0.0).astype(out_ref.dtype)


def gat_forward(self_vecs, neigh_vecs, w_t, b, *, tb=None):
    B, D = self_vecs.shape
    _, N, _ = neigh_vecs.shape
    O = w_t.shape[1]
    K = N + 1

    # Fuse the self vector into the neighbor slab once in the wrapper so the
    # kernel reduces over a contiguous, sublane-aligned (K=8) axis.
    neigh_self = jnp.concatenate([neigh_vecs, self_vecs[:, None, :]], axis=1)  # (B, K, D)

    if tb is None:
        tb = B            # single grid step: no per-step overhead, W/b DMA'd once
    assert B % tb == 0
    grid = (B // tb,)

    return pl.pallas_call(
        gat_kernel,
        out_shape=jax.ShapeDtypeStruct((B, O), jnp.float32),
        grid_spec=pltpu.PrefetchScalarGridSpec(
            num_scalar_prefetch=0,
            grid=grid,
            in_specs=[
                pl.BlockSpec((tb, D), lambda i: (i, 0)),        # self_vecs tile
                pl.BlockSpec((tb, K, D), lambda i: (i, 0, 0)),  # fused neigh+self tile
                pl.BlockSpec((D, O), lambda i: (0, 0)),         # fc weight (pre-transposed)
                pl.BlockSpec((1, O), lambda i: (0, 0)),         # fc bias
            ],
            out_specs=pl.BlockSpec((tb, O), lambda i: (i, 0)),
        ),
        compiler_params=pltpu.CompilerParams(
            dimension_semantics=("parallel",)),
    )(self_vecs, neigh_self, w_t, b)


def gat_reference(self_vecs, neigh_vecs, w_t, b):
    sv = self_vecs[:, None, :]                                  # (B, 1, D)
    ns = jnp.concatenate([neigh_vecs, sv], axis=1)              # (B, N+1, D)
    score = jax.nn.softmax(jnp.einsum("bqd,bkd->bqk", sv, ns), axis=-1)
    context = jnp.einsum("bqk,bkd->bqd", score, ns)[:, 0, :]    # (B, D)
    return jax.nn.relu(context @ w_t + b)


if __name__ == "__main__":
    # Small shapes consistent with the module: batch=16, neighbors=7,
    # input_dim=32, output_dim=32.
    B, N, D, O = 16, 7, 32, 32

    key = jax.random.PRNGKey(0)
    k1, k2, k3, k4 = jax.random.split(key, 4)

    self_vecs = jax.random.normal(k1, (B, D), dtype=jnp.float32)
    neigh_vecs = jax.random.normal(k2, (B, N, D), dtype=jnp.float32)

    # fc = nn.Linear(D, O, bias=True) with xavier_uniform_ weight.
    # PyTorch weight is (O, D); we pass it pre-transposed as (D, O).
    xavier_bound = (6.0 / (D + O)) ** 0.5
    w_t = jax.random.uniform(k3, (D, O), dtype=jnp.float32,
                             minval=-xavier_bound, maxval=xavier_bound)
    bias_bound = 1.0 / (D ** 0.5)
    b = jax.random.uniform(k4, (1, O), dtype=jnp.float32,
                           minval=-bias_bound, maxval=bias_bound)

    out = gat_forward(self_vecs, neigh_vecs, w_t, b)   # tb defaults to full batch
    out = jax.block_until_ready(out)

    ref = gat_reference(self_vecs, neigh_vecs, w_t, b)
    assert out.shape == (B, O)
    # approx=True softmax reciprocal -> slightly relaxed tolerance.
    assert jnp.allclose(out, ref, atol=2e-3, rtol=2e-3), "mismatch vs reference"

    print("KERNEL_OK")
</pallas_src>

<mosaic_0001>
module attributes {stable_mosaic.version = 11 : i64} {
  func.func @gat_kernel(%arg0: i32, %arg1: memref<16x32xf32, #tpu.memory_space<vmem>>, %arg2: memref<16x8x32xf32, #tpu.memory_space<vmem>>, %arg3: memref<32x32xf32, #tpu.memory_space<vmem>>, %arg4: memref<1x32xf32, #tpu.memory_space<vmem>>, %arg5: memref<16x32xf32, #tpu.memory_space<vmem>>) attributes {dimension_semantics = [#tpu.dimension_semantics<parallel>], iteration_bounds = array<i64: 1>, scalar_prefetch = 0 : i64, scratch_operands = 0 : i64, tpu.core_type = #tpu.core_type<tc>, window_params = [{transform_indices = @transform_0, window_bounds = array<i64: 16, 32>}, {transform_indices = @transform_1, window_bounds = array<i64: 16, 8, 32>}, {pipeline_mode = #tpu.pipeline_mode<synchronous>, transform_indices = @transform_2, window_bounds = array<i64: 32, 32>}, {pipeline_mode = #tpu.pipeline_mode<synchronous>, transform_indices = @transform_3, window_bounds = array<i64: 1, 32>}, {transform_indices = @transform_4, window_bounds = array<i64: 16, 32>}]} {
    %c0 = arith.constant 0 : index
    %c0_0 = arith.constant 0 : index
    %0 = vector.load %arg1[%c0, %c0_0] : memref<16x32xf32, #tpu.memory_space<vmem>>, vector<16x32xf32>
    %1 = vector.shape_cast %0 : vector<16x32xf32> to vector<16x1x32xf32>
    %c0_1 = arith.constant 0 : index
    %c0_2 = arith.constant 0 : index
    %c0_3 = arith.constant 0 : index
    %2 = vector.load %arg2[%c0_1, %c0_2, %c0_3] : memref<16x8x32xf32, #tpu.memory_space<vmem>>, vector<16x8x32xf32>
    "tpu.trace_start"() <{level = 10 : i32, message = "bqd,bkd->bqk"}> : () -> ()
    %cst = arith.constant dense<0.000000e+00> : vector<16x1x8xf32>
    %3 = tpu.matmul %1, %2, %cst {dimension_numbers = #tpu.dot_dimension_numbers<[2], [2], [1], [1], [0, 0, 0, 1, 1, 1], [0], [0]>} : vector<16x1x32xf32>, vector<16x8x32xf32>, vector<16x1x8xf32> -> vector<16x1x8xf32>
    "tpu.trace_stop"() : () -> ()
    %cst_4 = arith.constant dense<0xFF800000> : vector<16x1xf32>
    %4 = vector.multi_reduction <maximumf>, %3, %cst_4 [2] : vector<16x1x8xf32> to vector<16x1xf32>
    %5 = vector.shape_cast %4 : vector<16x1xf32> to vector<16x1x1xf32>
    %6 = vector.broadcast %5 : vector<16x1x1xf32> to vector<16x1x8xf32>
    %7 = arith.subf %3, %6 : vector<16x1x8xf32>
    %8 = math.exp %7 : vector<16x1x8xf32>
    %cst_5 = arith.constant dense<0.000000e+00> : vector<16x1xf32>
    %9 = vector.multi_reduction <add>, %8, %cst_5 [2] : vector<16x1x8xf32> to vector<16x1xf32>
    %10 = vector.shape_cast %9 : vector<16x1xf32> to vector<16x1x1xf32>
    %11 = tpu.reciprocal %10 {approx = true} : vector<16x1x1xf32> -> vector<16x1x1xf32>
    %12 = vector.broadcast %11 : vector<16x1x1xf32> to vector<16x1x8xf32>
    %13 = arith.mulf %8, %12 : vector<16x1x8xf32>
    "tpu.trace_start"() <{level = 10 : i32, message = "bqk,bkd->bqd"}> : () -> ()
    %cst_6 = arith.constant dense<0.000000e+00> : vector<16x1x32xf32>
    %14 = tpu.matmul %13, %2, %cst_6 {dimension_numbers = #tpu.dot_dimension_numbers<[2], [1], [1], [2], [0, 0, 0, 1, 1, 2], [0], [0]>} : vector<16x1x8xf32>, vector<16x8x32xf32>, vector<16x1x32xf32> -> vector<16x1x32xf32>
    "tpu.trace_stop"() : () -> ()
    %15 = vector.shape_cast %14 : vector<16x1x32xf32> to vector<16x32xf32>
    %c0_7 = arith.constant 0 : index
    %c0_8 = arith.constant 0 : index
    %16 = vector.load %arg3[%c0_7, %c0_8] : memref<32x32xf32, #tpu.memory_space<vmem>>, vector<32x32xf32>
    %cst_9 = arith.constant dense<0.000000e+00> : vector<16x32xf32>
    %17 = tpu.matmul %15, %16, %cst_9 {dimension_numbers = #tpu.dot_dimension_numbers<[1], [0], [0], [1], [0, 0, 1, 1], [], []>} : vector<16x32xf32>, vector<32x32xf32>, vector<16x32xf32> -> vector<16x32xf32>
    %c0_10 = arith.constant 0 : index
    %c0_11 = arith.constant 0 : index
    %18 = vector.load %arg4[%c0_10, %c0_11] : memref<1x32xf32, #tpu.memory_space<vmem>>, vector<1x32xf32>
    %19 = vector.broadcast %18 : vector<1x32xf32> to vector<16x32xf32>
    %20 = arith.addf %17, %19 : vector<16x32xf32>
    %cst_12 = arith.constant 0.000000e+00 : f32
    %21 = vector.broadcast %cst_12 : f32 to vector<16x32xf32>
    %22 = arith.maximumf %20, %21 : vector<16x32xf32>
    %c0_13 = arith.constant 0 : index
    %c0_14 = arith.constant 0 : index
    %23 = vector.load %arg5[%c0_13, %c0_14] : memref<16x32xf32, #tpu.memory_space<vmem>>, vector<16x32xf32>
    tpu.vector_store %arg5[%c0_13, %c0_14], %22 {strides = array<i32>} : memref<16x32xf32, #tpu.memory_space<vmem>>, vector<16x32xf32>,
    return
  }
  func.func @transform_0(%arg0: i32) -> (i32, i32) {
    %c0_i32 = arith.constant 0 : i32
    %c0_i32_0 = arith.constant 0 : i32
    return %arg0, %c0_i32 : i32, i32
  }
  func.func @transform_1(%arg0: i32) -> (i32, i32, i32) {
    %c0_i32 = arith.constant 0 : i32
    %c0_i32_0 = arith.constant 0 : i32
    %c0_i32_1 = arith.constant 0 : i32
    return %arg0, %c0_i32, %c0_i32_0 : i32, i32, i32
  }
  func.func @transform_2(%arg0: i32) -> (i32, i32) {
    %c0_i32 = arith.constant 0 : i32
    %c0_i32_0 = arith.constant 0 : i32
    %c0_i32_1 = arith.constant 0 : i32
    return %c0_i32, %c0_i32_0 : i32, i32
  }
  func.func @transform_3(%arg0: i32) -> (i32, i32) {
    %c0_i32 = arith.constant 0 : i32
    %c0_i32_0 = arith.constant 0 : i32
    %c0_i32_1 = arith.constant 0 : i32
    return %c0_i32, %c0_i32_0 : i32, i32
  }
  func.func @transform_4(%arg0: i32) -> (i32, i32) {
    %c0_i32 = arith.constant 0 : i32
    %c0_i32_0 = arith.constant 0 : i32
    return %arg0, %c0_i32 : i32, i32
  }
}

</mosaic_0001>

<llo_original>
// kernel: tpu_custom_call.1
$region0: #{tpu_custom_call.1}
  #allocation0 [shape = 'u32[]', space=smem, size = 0x4, offset = 0x4, fixed_abs, tag = 'smem constant byte address 0x4 - core index']
  #allocation1 [shape = 'u32[144,128]{1,0:T(1,128)}', space=vmem, size = 0x12000, scoped, tag = 'internal scratch']
  %s0 = inlined_call_operand.hbm [shape: f32[16,32], index: 0, kind: input, shape index: {}]
  %s1 = inlined_call_operand.hbm [shape: f32[16,8,32], index: 1, kind: input, shape index: {}]
  %s2 = inlined_call_operand.hbm [shape: f32[32,32], index: 2, kind: input, shape index: {}]
  %s3 = inlined_call_operand.vmem [shape: f32[1,32], index: 3, kind: input, shape index: {}]
  %s4 = inlined_call_operand.hbm [shape: f32[16,32], index: 4, kind: output, shape index: {}]
  %s5 = sld [smem:[#allocation0]]
  $region38: #{tpu_custom_call.1} parent=0
    _
  %s7 = ssub.s32 1, %s5
  %s8 = scalar_select 0, %s7, %s5
  $region1: #{tpu_custom_call.1} parent=0
    #allocation2 [shape = 'u8[8192]{0}', space=vmem, size = 0x2000, scoped, tag = 'input window, operand 0, single buffered']
    #allocation3 [shape = 's32[1]{0}', space=sflag, size = 0x4, scoped, tag = 'scoped memory for tpu_custom_call.1']
    #allocation4 [shape = 's32[1]{0}', space=sflag, size = 0x4, scoped, tag = 'scoped memory for tpu_custom_call.1']
    #allocation5 [shape = 'u8[65536]{0}', space=vmem, size = 0x10000, scoped, tag = 'input window, operand 1, single buffered']
    #allocation6 [shape = 's32[1]{0}', space=sflag, size = 0x4, scoped, tag = 'scoped memory for tpu_custom_call.1']
    #allocation7 [shape = 'u8[16384]{0}', space=vmem, size = 0x4000, scoped, tag = 'input window, operand 2, single buffered']
    #allocation8 [shape = 'u8[8192]{0}', space=vmem, size = 0x2000, scoped, tag = 'output window, operand 0, single buffered']
    %9 = vsyncpa [#allocation3], 0
    %10 = vsyncpa [#allocation6], 0
    %11 = vsyncpa [#allocation4], 0
    // Predicated region
    $region2: #{tpu_custom_call.1} parent=1 // pred_check
      _
    $region3: #{tpu_custom_call.1} parent=1 // pred_check_branch
      %13 = sbr.rel (0) target = $region5
    $region4: #{tpu_custom_call.1} parent=1 // pred_region
      %s15 = ssub.s32 256, 256
      %16 = vsyncadd [#allocation3], %s15
      %s17 = sshll.u32 [#allocation2], 4
      %s18 = int_to_ptr.vmem [resolvable:$true] %s17
      %23 = dma.hbm_to_vmem [thread:$0]  %s0, 256, %s18, [#allocation3], 128, 128, 8
    $region5: #{tpu_custom_call.1} parent=1 // pred_fallthru
      _
    // Predicated region
    $region6: #{tpu_custom_call.1} parent=1 // pred_check
      _
    $region7: #{tpu_custom_call.1} parent=1 // pred_check_branch
      %25 = sbr.rel (0) target = $region9
    $region8: #{tpu_custom_call.1} parent=1 // pred_region
      %s27 = ssub.s32 2048, 2048
      %28 = vsyncadd [#allocation6], %s27
      %s29 = sshll.u32 [#allocation5], 4
      %s30 = int_to_ptr.vmem [resolvable:$true] %s29
      %35 = dma.hbm_to_vmem [thread:$0]  %s1, 2048, %s30, [#allocation6], 128, 128, 8
    $region9: #{tpu_custom_call.1} parent=1 // pred_fallthru
      _
    // Predicated region
    $region10: #{tpu_custom_call.1} parent=1 // pred_check
      _
    $region11: #{tpu_custom_call.1} parent=1 // pred_check_branch
      %37 = sbr.rel (0) target = $region13
    $region12: #{tpu_custom_call.1} parent=1 // pred_region
      %s39 = ssub.s32 512, 512
      %40 = vsyncadd [#allocation6], %s39
      %s41 = sshll.u32 [#allocation7], 4
      %s42 = int_to_ptr.vmem [resolvable:$true] %s41
      %47 = dma.hbm_to_vmem [thread:$0]  %s2, 512, %s42, [#allocation6], 128, 128, 8
    $region13: #{tpu_custom_call.1} parent=1 // pred_fallthru
      _
    // Predicated region
    $region14: #{tpu_custom_call.1} parent=1 // pred_check
      _
    $region15: #{tpu_custom_call.1} parent=1 // pred_check_branch
      %49 = sbr.rel (0) target = $region17
    $region16: #{tpu_custom_call.1} parent=1 // pred_region
      _
    $region17: #{tpu_custom_call.1} parent=1 // pred_fallthru
      _
    // Predicated region
    $region18: #{tpu_custom_call.1} parent=1 // pred_check
      _
    $region19: #{tpu_custom_call.1} parent=1 // pred_check_branch
      %51 = sbr.rel (0) target = $region21
    $region20: #{tpu_custom_call.1} parent=1 // pred_region
      %52 = dma.done [#allocation3], 256
    $region21: #{tpu_custom_call.1} parent=1 // pred_fallthru
      _
    // Predicated region
    $region22: #{tpu_custom_call.1} parent=1 // pred_check
      _
    $region23: #{tpu_custom_call.1} parent=1 // pred_check_branch
      %54 = sbr.rel (0) target = $region25
    $region24: #{tpu_custom_call.1} parent=1 // pred_region
      %55 = dma.done [#allocation6], 2048
    $region25: #{tpu_custom_call.1} parent=1 // pred_fallthru
      _
    // Predicated region
    $region26: #{tpu_custom_call.1} parent=1 // pred_check
      _
    $region27: #{tpu_custom_call.1} parent=1 // pred_check_branch
      %57 = sbr.rel (0) target = $region29
    $region28: #{tpu_custom_call.1} parent=1 // pred_region
      %58 = dma.done [#allocation6], 512
    $region29: #{tpu_custom_call.1} parent=1 // pred_fallthru
      _
    %v59 = vld [vmem:[#allocation2] sm:$0xff]
    %v60 = vld [vmem:[#allocation2 + $0x8] sm:$0xff]
    %v63 = vcombine.high %v59, %v59
    %v65 = vunpack.c.l.s4 1966171168
    %v66 = vunpack.c.0.s8 %v65
    %v67 = vlaneseq
    %v68 = vshrl.u32 %v67, 7
    %v69 = vsub.s32 %v66, %v68
    %v70 = vrot.slane %v59, %v69
    %v72 = vunpack.c.l.s4 1966171168
    %v73 = vunpack.c.0.s8 %v72
    %v74 = vlaneseq
    %v75 = vshrl.u32 %v74, 7
    %v76 = vsub.s32 %v73, %v75
    %v77 = vrot.slane %v63, %v76
    %v78 = vcombine.high %v70, %v70
    %v79 = vcombine.high %v77, %v77
    %v81 = vunpack.c.l.s4 1966171168
    %v82 = vunpack.c.0.s8 %v81
    %v83 = vlaneseq
    %v84 = vshrl.u32 %v83, 7
    %v85 = vsub.s32 %v82, %v84
    %v86 = vrot.slane %v70, %v85
    %v88 = vunpack.c.l.s4 1966171168
    %v89 = vunpack.c.0.s8 %v88
    %v90 = vlaneseq
    %v91 = vshrl.u32 %v90, 7
    %v92 = vsub.s32 %v89, %v91
    %v93 = vrot.slane %v77, %v92
    %v95 = vunpack.c.l.s4 1966171168
    %v96 = vunpack.c.0.s8 %v95
    %v97 = vlaneseq
    %v98 = vshrl.u32 %v97, 7
    %v99 = vsub.s32 %v96, %v98
    %v100 = vrot.slane %v78, %v99
    %v102 = vunpack.c.l.s4 1966171168
    %v103 = vunpack.c.0.s8 %v102
    %v104 = vlaneseq
    %v105 = vshrl.u32 %v104, 7
    %v106 = vsub.s32 %v103, %v105
    %v107 = vrot.slane %v79, %v106
    %v108 = vcombine.high %v86, %v86
    %v109 = vcombine.high %v93, %v93
    %v110 = vcombine.high %v100, %v100
    %v111 = vcombine.high %v107, %v107
    %v112 = vcombine.high %v60, %v60
    %v114 = vunpack.c.l.s4 1966171168
    %v115 = vunpack.c.0.s8 %v114
    %v116 = vlaneseq
    %v117 = vshrl.u32 %v116, 7
    %v118 = vsub.s32 %v115, %v117
    %v119 = vrot.slane %v60, %v118
    %v121 = vunpack.c.l.s4 1966171168
    %v122 = vunpack.c.0.s8 %v121
    %v123 = vlaneseq
    %v124 = vshrl.u32 %v123, 7
    %v125 = vsub.s32 %v122, %v124
    %v126 = vrot.slane %v112, %v125
    %v127 = vcombine.high %v119, %v119
    %v128 = vcombine.high %v126, %v126
    %v130 = vunpack.c.l.s4 1966171168
    %v131 = vunpack.c.0.s8 %v130
    %v132 = vlaneseq
    %v133 = vshrl.u32 %v132, 7
    %v134 = vsub.s32 %v131, %v133
    %v135 = vrot.slane %v119, %v134
    %v137 = vunpack.c.l.s4 1966171168
    %v138 = vunpack.c.0.s8 %v137
    %v139 = vlaneseq
    %v140 = vshrl.u32 %v139, 7
    %v141 = vsub.s32 %v138, %v140
    %v142 = vrot.slane %v126, %v141
    %v144 = vunpack.c.l.s4 1966171168
    %v145 = vunpack.c.0.s8 %v144
    %v146 = vlaneseq
    %v147 = vshrl.u32 %v146, 7
    %v148 = vsub.s32 %v145, %v147
    %v149 = vrot.slane %v127, %v148
    %v151 = vunpack.c.l.s4 1966171168
    %v152 = vunpack.c.0.s8 %v151
    %v153 = vlaneseq
    %v154 = vshrl.u32 %v153, 7
    %v155 = vsub.s32 %v152, %v154
    %v156 = vrot.slane %v128, %v155
    %v157 = vcombine.high %v135, %v135
    %v158 = vcombine.high %v142, %v142
    %v159 = vcombine.high %v149, %v149
    %v160 = vcombine.high %v156, %v156
    %v161 = vld [vmem:[#allocation5] sm:$0xff]
    %v162 = vld [vmem:[#allocation5 + $0x8] sm:$0xff]
    %v163 = vld [vmem:[#allocation5 + $0x10] sm:$0xff]
    %v164 = vld [vmem:[#allocation5 + $0x18] sm:$0xff]
    %v165 = vld [vmem:[#allocation5 + $0x20] sm:$0xff]
    %v166 = vld [vmem:[#allocation5 + $0x28] sm:$0xff]
    %v167 = vld [vmem:[#allocation5 + $0x30] sm:$0xff]
    %v168 = vld [vmem:[#allocation5 + $0x38] sm:$0xff]
    %v169 = vld [vmem:[#allocation5 + $0x40] sm:$0xff]
    %v170 = vld [vmem:[#allocation5 + $0x48] sm:$0xff]
    %v171 = vld [vmem:[#allocation5 + $0x50] sm:$0xff]
    %v172 = vld [vmem:[#allocation5 + $0x58] sm:$0xff]
    %v173 = vld [vmem:[#allocation5 + $0x60] sm:$0xff]
    %v174 = vld [vmem:[#allocation5 + $0x68] sm:$0xff]
    %v175 = vld [vmem:[#allocation5 + $0x70] sm:$0xff]
    %v176 = vld [vmem:[#allocation5 + $0x78] sm:$0xff]
    %vm177 = vcmask 261120
    %v178 = vsel %vm177, %v86, 0
    %v181 = vsel %vm177, %v161, 0
    %183 = vmatprep.subr.mxu0 0.0
    %184 = vmatpush1.xpose.msra.mxu0 0.0
    %185 = vmatprep.subr.mxu0 0.0
    %186 = vmatpush1.xpose.msra.mxu0 0.0
    %187 = vmatprep.subr.mxu0 0.0
    %188 = vmatpush1.xpose.msra.mxu0 0.0
    %189 = vmatprep.subr.mxu0 0.0
    %190 = vmatpush1.xpose.msra.mxu0 0.0
    %191 = vmatprep.subr.mxu0 0.0
    %192 = vmatpush1.xpose.msra.mxu0 0.0
    %193 = vmatprep.subr.mxu0 0.0
    %194 = vmatpush1.xpose.msra.mxu0 0.0
    %195 = vmatprep.subr.mxu0 0.0
    %196 = vmatpush1.xpose.msra.mxu0 0.0
    %197 = vmatprep.subr.mxu0 0.0
    %198 = vmatpush1.xpose.msra.mxu0 0.0
    %199 = vmatprep.subr.mxu0 0.0
    %200 = vmatpush1.xpose.msra.mxu0 0.0
    %201 = vmatprep.subr.mxu0 0.0
    %202 = vmatpush1.xpose.msra.mxu0 0.0
    %203 = vmatprep.subr.mxu0 0.0
    %204 = vmatpush1.xpose.msra.mxu0 0.0
    %205 = vmatprep.subr.mxu0 0.0
    %206 = vmatpush1.xpose.msra.mxu0 0.0
    %207 = vmatprep.subr.mxu0 0.0
    %208 = vmatpush1.xpose.msra.mxu0 0.0
    %209 = vmatprep.subr.mxu0 0.0
    %210 = vmatpush1.xpose.msra.mxu0 0.0
    %211 = vmatprep.subr.mxu0 0.0
    %212 = vmatpush1.xpose.msra.mxu0 0.0
    %213 = vmatprep.subr.mxu0 0.0
    %214 = vmatpush1.xpose.msra.mxu0 %v181
    %215 = vmatprep.subr.mxu0 0.0
    %216 = vmatpush2.xpose.msra.mxu0 0.0
    %217 = vmatprep.subr.mxu0 0.0
    %218 = vmatpush2.xpose.msra.mxu0 0.0
    %219 = vmatprep.subr.mxu0 0.0
    %220 = vmatpush2.xpose.msra.mxu0 0.0
    %221 = vmatprep.subr.mxu0 0.0
    %222 = vmatpush2.xpose.msra.mxu0 0.0
    %223 = vmatprep.subr.mxu0 0.0
    %224 = vmatpush2.xpose.msra.mxu0 0.0
    %225 = vmatprep.subr.mxu0 0.0
    %226 = vmatpush2.xpose.msra.mxu0 0.0
    %227 = vmatprep.subr.mxu0 0.0
    %228 = vmatpush2.xpose.msra.mxu0 0.0
    %229 = vmatprep.subr.mxu0 0.0
    %230 = vmatpush2.xpose.msra.mxu0 0.0
    %231 = vmatprep.subr.mxu0 0.0
    %232 = vmatpush2.xpose.msra.mxu0 0.0
    %233 = vmatprep.subr.mxu0 0.0
    %234 = vmatpush2.xpose.msra.mxu0 0.0
    %235 = vmatprep.subr.mxu0 0.0
    %236 = vmatpush2.xpose.msra.mxu0 0.0
    %237 = vmatprep.subr.mxu0 0.0
    %238 = vmatpush2.xpose.msra.mxu0 0.0
    %239 = vmatprep.subr.mxu0 0.0
    %240 = vmatpush2.xpose.msra.mxu0 0.0
    %241 = vmatprep.subr.mxu0 0.0
    %242 = vmatpush2.xpose.msra.mxu0 0.0
    %243 = vmatprep.subr.mxu0 0.0
    %244 = vmatpush2.xpose.msra.mxu0 0.0
    %245 = vmatprep.subr.mxu0 0.0
    %246 = vmatpush2.xpose.msra.mxu0 0.0
    %247 = vmatprep.mubr.f32.mxu0 0.0
    %248 = vmatmul.mubr.f32.gmra.mxu0 %v178
    %v249 = vpop.f32.mrf.mxu0
    %v250 = vadd.f32 0.0, %v249
    %v251 = vpop.f32.mrf.mxu0
    %252 = vdwg.mxu0
    %v253 = vsel %vm177, %v100, 0
    %v256 = vsel %vm177, %v162, 0
    %258 = vmatprep.subr.mxu0 0.0
    %259 = vmatpush1.xpose.msra.mxu0 0.0
    %260 = vmatprep.subr.mxu0 0.0
    %261 = vmatpush1.xpose.msra.mxu0 0.0
    %262 = vmatprep.subr.mxu0 0.0
    %263 = vmatpush1.xpose.msra.mxu0 0.0
    %264 = vmatprep.subr.mxu0 0.0
    %265 = vmatpush1.xpose.msra.mxu0 0.0
    %266 = vmatprep.subr.mxu0 0.0
    %267 = vmatpush1.xpose.msra.mxu0 0.0
    %268 = vmatprep.subr.mxu0 0.0
    %269 = vmatpush1.xpose.msra.mxu0 0.0
    %270 = vmatprep.subr.mxu0 0.0
    %271 = vmatpush1.xpose.msra.mxu0 0.0
    %272 = vmatprep.subr.mxu0 0.0
    %273 = vmatpush1.xpose.msra.mxu0 0.0
    %274 = vmatprep.subr.mxu0 0.0
    %275 = vmatpush1.xpose.msra.mxu0 0.0
    %276 = vmatprep.subr.mxu0 0.0
    %277 = vmatpush1.xpose.msra.mxu0 0.0
    %278 = vmatprep.subr.mxu0 0.0
    %279 = vmatpush1.xpose.msra.mxu0 0.0
    %280 = vmatprep.subr.mxu0 0.0
    %281 = vmatpush1.xpose.msra.mxu0 0.0
    %282 = vmatprep.subr.mxu0 0.0
    %283 = vmatpush1.xpose.msra.mxu0 0.0
    %284 = vmatprep.subr.mxu0 0.0
    %285 = vmatpush1.xpose.msra.mxu0 0.0
    %286 = vmatprep.subr.mxu0 0.0
    %287 = vmatpush1.xpose.msra.mxu0 0.0
    %288 = vmatprep.subr.mxu0 0.0
    %289 = vmatpush1.xpose.msra.mxu0 %v256
    %290 = vmatprep.subr.mxu0 0.0
    %291 = vmatpush2.xpose.msra.mxu0 0.0
    %292 = vmatprep.subr.mxu0 0.0
    %293 = vmatpush2.xpose.msra.mxu0 0.0
    %294 = vmatprep.subr.mxu0 0.0
    %295 = vmatpush2.xpose.msra.mxu0 0.0
    %296 = vmatprep.subr.mxu0 0.0
    %297 = vmatpush2.xpose.msra.mxu0 0.0
    %298 = vmatprep.subr.mxu0 0.0
    %299 = vmatpush2.xpose.msra.mxu0 0.0
    %300 = vmatprep.subr.mxu0 0.0
    %301 = vmatpush2.xpose.msra.mxu0 0.0
    %302 = vmatprep.subr.mxu0 0.0
    %303 = vmatpush2.xpose.msra.mxu0 0.0
    %304 = vmatprep.subr.mxu0 0.0
    %305 = vmatpush2.xpose.msra.mxu0 0.0
    %306 = vmatprep.subr.mxu0 0.0
    %307 = vmatpush2.xpose.msra.mxu0 0.0
    %308 = vmatprep.subr.mxu0 0.0
    %309 = vmatpush2.xpose.msra.mxu0 0.0
    %310 = vmatprep.subr.mxu0 0.0
    %311 = vmatpush2.xpose.msra.mxu0 0.0
    %312 = vmatprep.subr.mxu0 0.0
    %313 = vmatpush2.xpose.msra.mxu0 0.0
    %314 = vmatprep.subr.mxu0 0.0
    %315 = vmatpush2.xpose.msra.mxu0 0.0
    %316 = vmatprep.subr.mxu0 0.0
    %317 = vmatpush2.xpose.msra.mxu0 0.0
    %318 = vmatprep.subr.mxu0 0.0
    %319 = vmatpush2.xpose.msra.mxu0 0.0
    %320 = vmatprep.subr.mxu0 0.0
    %321 = vmatpush2.xpose.msra.mxu0 0.0
    %322 = vmatprep.mubr.f32.mxu0 0.0
    %323 = vmatmul.mubr.f32.gmra.mxu0 %v253
    %v324 = vpop.f32.mrf.mxu0
    %v325 = vadd.f32 0.0, %v324
    %v326 = vpop.f32.mrf.mxu0
    %327 = vdwg.mxu0
    %v328 = vsel %vm177, %v108, 0
    %v331 = vsel %vm177, %v163, 0
    %333 = vmatprep.subr.mxu0 0.0
    %334 = vmatpush1.xpose.msra.mxu0 0.0
    %335 = vmatprep.subr.mxu0 0.0
    %336 = vmatpush1.xpose.msra.mxu0 0.0
    %337 = vmatprep.subr.mxu0 0.0
    %338 = vmatpush1.xpose.msra.mxu0 0.0
    %339 = vmatprep.subr.mxu0 0.0
    %340 = vmatpush1.xpose.msra.mxu0 0.0
    %341 = vmatprep.subr.mxu0 0.0
    %342 = vmatpush1.xpose.msra.mxu0 0.0
    %343 = vmatprep.subr.mxu0 0.0
    %344 = vmatpush1.xpose.msra.mxu0 0.0
    %345 = vmatprep.subr.mxu0 0.0
    %346 = vmatpush1.xpose.msra.mxu0 0.0
    %347 = vmatprep.subr.mxu0 0.0
    %348 = vmatpush1.xpose.msra.mxu0 0.0
    %349 = vmatprep.subr.mxu0 0.0
    %350 = vmatpush1.xpose.msra.mxu0 0.0
    %351 = vmatprep.subr.mxu0 0.0
    %352 = vmatpush1.xpose.msra.mxu0 0.0
    %353 = vmatprep.subr.mxu0 0.0
    %354 = vmatpush1.xpose.msra.mxu0 0.0
    %355 = vmatprep.subr.mxu0 0.0
    %356 = vmatpush1.xpose.msra.mxu0 0.0
    %357 = vmatprep.subr.mxu0 0.0
    %358 = vmatpush1.xpose.msra.mxu0 0.0
    %359 = vmatprep.subr.mxu0 0.0
    %360 = vmatpush1.xpose.msra.mxu0 0.0
    %361 = vmatprep.subr.mxu0 0.0
    %362 = vmatpush1.xpose.msra.mxu0 0.0
    %363 = vmatprep.subr.mxu0 0.0
    %364 = vmatpush1.xpose.msra.mxu0 %v331
    %365 = vmatprep.subr.mxu0 0.0
    %366 = vmatpush2.xpose.msra.mxu0 0.0
    %367 = vmatprep.subr.mxu0 0.0
    %368 = vmatpush2.xpose.msra.mxu0 0.0
    %369 = vmatprep.subr.mxu0 0.0
    %370 = vmatpush2.xpose.msra.mxu0 0.0
    %371 = vmatprep.subr.mxu0 0.0
    %372 = vmatpush2.xpose.msra.mxu0 0.0
    %373 = vmatprep.subr.mxu0 0.0
    %374 = vmatpush2.xpose.msra.mxu0 0.0
    %375 = vmatprep.subr.mxu0 0.0
    %376 = vmatpush2.xpose.msra.mxu0 0.0
    %377 = vmatprep.subr.mxu0 0.0
    %378 = vmatpush2.xpose.msra.mxu0 0.0
    %379 = vmatprep.subr.mxu0 0.0
    %380 = vmatpush2.xpose.msra.mxu0 0.0
    %381 = vmatprep.subr.mxu0 0.0
    %382 = vmatpush2.xpose.msra.mxu0 0.0
    %383 = vmatprep.subr.mxu0 0.0
    %384 = vmatpush2.xpose.msra.mxu0 0.0
    %385 = vmatprep.subr.mxu0 0.0
    %386 = vmatpush2.xpose.msra.mxu0 0.0
    %387 = vmatprep.subr.mxu0 0.0
    %388 = vmatpush2.xpose.msra.mxu0 0.0
    %389 = vmatprep.subr.mxu0 0.0
    %390 = vmatpush2.xpose.msra.mxu0 0.0
    %391 = vmatprep.subr.mxu0 0.0
    %392 = vmatpush2.xpose.msra.mxu0 0.0
    %393 = vmatprep.subr.mxu0 0.0
    %394 = vmatpush2.xpose.msra.mxu0 0.0
    %395 = vmatprep.subr.mxu0 0.0
    %396 = vmatpush2.xpose.msra.mxu0 0.0
    %397 = vmatprep.mubr.f32.mxu0 0.0
    %398 = vmatmul.mubr.f32.gmra.mxu0 %v328
    %v399 = vpop.f32.mrf.mxu0
    %v400 = vadd.f32 0.0, %v399
    %v401 = vpop.f32.mrf.mxu0
    %402 = vdwg.mxu0
    %v403 = vsel %vm177, %v110, 0
    %v406 = vsel %vm177, %v164, 0
    %408 = vmatprep.subr.mxu0 0.0
    %409 = vmatpush1.xpose.msra.mxu0 0.0
    %410 = vmatprep.subr.mxu0 0.0
    %411 = vmatpush1.xpose.msra.mxu0 0.0
    %412 = vmatprep.subr.mxu0 0.0
    %413 = vmatpush1.xpose.msra.mxu0 0.0
    %414 = vmatprep.subr.mxu0 0.0
    %415 = vmatpush1.xpose.msra.mxu0 0.0
    %416 = vmatprep.subr.mxu0 0.0
    %417 = vmatpush1.xpose.msra.mxu0 0.0
    %418 = vmatprep.subr.mxu0 0.0
    %419 = vmatpush1.xpose.msra.mxu0 0.0
    %420 = vmatprep.subr.mxu0 0.0
    %421 = vmatpush1.xpose.msra.mxu0 0.0
    %422 = vmatprep.subr.mxu0 0.0
    %423 = vmatpush1.xpose.msra.mxu0 0.0
    %424 = vmatprep.subr.mxu0 0.0
    %425 = vmatpush1.xpose.msra.mxu0 0.0
    %426 = vmatprep.subr.mxu0 0.0
    %427 = vmatpush1.xpose.msra.mxu0 0.0
    %428 = vmatprep.subr.mxu0 0.0
    %429 = vmatpush1.xpose.msra.mxu0 0.0
    %430 = vmatprep.subr.mxu0 0.0
    %431 = vmatpush1.xpose.msra.mxu0 0.0
    %432 = vmatprep.subr.mxu0 0.0
    %433 = vmatpush1.xpose.msra.mxu0 0.0
    %434 = vmatprep.subr.mxu0 0.0
    %435 = vmatpush1.xpose.msra.mxu0 0.0
    %436 = vmatprep.subr.mxu0 0.0
    %437 = vmatpush1.xpose.msra.mxu0 0.0
    %438 = vmatprep.subr.mxu0 0.0
    %439 = vmatpush1.xpose.msra.mxu0 %v406
    %440 = vmatprep.subr.mxu0 0.0
    %441 = vmatpush2.xpose.msra.mxu0 0.0
    %442 = vmatprep.subr.mxu0 0.0
    %443 = vmatpush2.xpose.msra.mxu0 0.0
    %444 = vmatprep.subr.mxu0 0.0
    %445 = vmatpush2.xpose.msra.mxu0 0.0
    %446 = vmatprep.subr.mxu0 0.0
    %447 = vmatpush2.xpose.msra.mxu0 0.0
    %448 = vmatprep.subr.mxu0 0.0
    %449 = vmatpush2.xpose.msra.mxu0 0.0
    %450 = vmatprep.subr.mxu0 0.0
    %451 = vmatpush2.xpose.msra.mxu0 0.0
    %452 = vmatprep.subr.mxu0 0.0
    %453 = vmatpush2.xpose.msra.mxu0 0.0
    %454 = vmatprep.subr.mxu0 0.0
    %455 = vmatpush2.xpose.msra.mxu0 0.0
    %456 = vmatprep.subr.mxu0 0.0
    %457 = vmatpush2.xpose.msra.mxu0 0.0
    %458 = vmatprep.subr.mxu0 0.0
    %459 = vmatpush2.xpose.msra.mxu0 0.0
    %460 = vmatprep.subr.mxu0 0.0
    %461 = vmatpush2.xpose.msra.mxu0 0.0
    %462 = vmatprep.subr.mxu0 0.0
    %463 = vmatpush2.xpose.msra.mxu0 0.0
    %464 = vmatprep.subr.mxu0 0.0
    %465 = vmatpush2.xpose.msra.mxu0 0.0
    %466 = vmatprep.subr.mxu0 0.0
    %467 = vmatpush2.xpose.msra.mxu0 0.0
    %468 = vmatprep.subr.mxu0 0.0
    %469 = vmatpush2.xpose.msra.mxu0 0.0
    %470 = vmatprep.subr.mxu0 0.0
    %471 = vmatpush2.xpose.msra.mxu0 0.0
    %472 = vmatprep.mubr.f32.mxu0 0.0
    %473 = vmatmul.mubr.f32.gmra.mxu0 %v403
    %v474 = vpop.f32.mrf.mxu0
    %v475 = vadd.f32 0.0, %v474
    %v476 = vpop.f32.mrf.mxu0
    %477 = vdwg.mxu0
    %v478 = vsel %vm177, %v93, 0
    %v481 = vsel %vm177, %v165, 0
    %483 = vmatprep.subr.mxu0 0.0
    %484 = vmatpush1.xpose.msra.mxu0 0.0
    %485 = vmatprep.subr.mxu0 0.0
    %486 = vmatpush1.xpose.msra.mxu0 0.0
    %487 = vmatprep.subr.mxu0 0.0
    %488 = vmatpush1.xpose.msra.mxu0 0.0
    %489 = vmatprep.subr.mxu0 0.0
    %490 = vmatpush1.xpose.msra.mxu0 0.0
    %491 = vmatprep.subr.mxu0 0.0
    %492 = vmatpush1.xpose.msra.mxu0 0.0
    %493 = vmatprep.subr.mxu0 0.0
    %494 = vmatpush1.xpose.msra.mxu0 0.0
    %495 = vmatprep.subr.mxu0 0.0
    %496 = vmatpush1.xpose.msra.mxu0 0.0
    %497 = vmatprep.subr.mxu0 0.0
    %498 = vmatpush1.xpose.msra.mxu0 0.0
    %499 = vmatprep.subr.mxu0 0.0
    %500 = vmatpush1.xpose.msra.mxu0 0.0
    %501 = vmatprep.subr.mxu0 0.0
    %502 = vmatpush1.xpose.msra.mxu0 0.0
    %503 = vmatprep.subr.mxu0 0.0
    %504 = vmatpush1.xpose.msra.mxu0 0.0
    %505 = vmatprep.subr.mxu0 0.0
    %506 = vmatpush1.xpose.msra.mxu0 0.0
    %507 = vmatprep.subr.mxu0 0.0
    %508 = vmatpush1.xpose.msra.mxu0 0.0
    %509 = vmatprep.subr.mxu0 0.0
    %510 = vmatpush1.xpose.msra.mxu0 0.0
    %511 = vmatprep.subr.mxu0 0.0
    %512 = vmatpush1.xpose.msra.mxu0 0.0
    %513 = vmatprep.subr.mxu0 0.0
    %514 = vmatpush1.xpose.msra.mxu0 %v481
    %515 = vmatprep.subr.mxu0 0.0
    %516 = vmatpush2.xpose.msra.mxu0 0.0
    %517 = vmatprep.subr.mxu0 0.0
    %518 = vmatpush2.xpose.msra.mxu0 0.0
    %519 = vmatprep.subr.mxu0 0.0
    %520 = vmatpush2.xpose.msra.mxu0 0.0
    %521 = vmatprep.subr.mxu0 0.0
    %522 = vmatpush2.xpose.msra.mxu0 0.0
    %523 = vmatprep.subr.mxu0 0.0
    %524 = vmatpush2.xpose.msra.mxu0 0.0
    %525 = vmatprep.subr.mxu0 0.0
    %526 = vmatpush2.xpose.msra.mxu0 0.0
    %527 = vmatprep.subr.mxu0 0.0
    %528 = vmatpush2.xpose.msra.mxu0 0.0
    %529 = vmatprep.subr.mxu0 0.0
    %530 = vmatpush2.xpose.msra.mxu0 0.0
    %531 = vmatprep.subr.mxu0 0.0
    %532 = vmatpush2.xpose.msra.mxu0 0.0
    %533 = vmatprep.subr.mxu0 0.0
    %534 = vmatpush2.xpose.msra.mxu0 0.0
    %535 = vmatprep.subr.mxu0 0.0
    %536 = vmatpush2.xpose.msra.mxu0 0.0
    %537 = vmatprep.subr.mxu0 0.0
    %538 = vmatpush2.xpose.msra.mxu0 0.0
    %539 = vmatprep.subr.mxu0 0.0
    %540 = vmatpush2.xpose.msra.mxu0 0.0
    %541 = vmatprep.subr.mxu0 0.0
    %542 = vmatpush2.xpose.msra.mxu0 0.0
    %543 = vmatprep.subr.mxu0 0.0
    %544 = vmatpush2.xpose.msra.mxu0 0.0
    %545 = vmatprep.subr.mxu0 0.0
    %546 = vmatpush2.xpose.msra.mxu0 0.0
    %547 = vmatprep.mubr.f32.mxu0 0.0
    %548 = vmatmul.mubr.f32.gmra.mxu0 %v478
    %v549 = vpop.f32.mrf.mxu0
    %v550 = vadd.f32 0.0, %v549
    %v551 = vpop.f32.mrf.mxu0
    %552 = vdwg.mxu0
    %v553 = vsel %vm177, %v107, 0
    %v556 = vsel %vm177, %v166, 0
    %558 = vmatprep.subr.mxu0 0.0
    %559 = vmatpush1.xpose.msra.mxu0 0.0
    %560 = vmatprep.subr.mxu0 0.0
    %561 = vmatpush1.xpose.msra.mxu0 0.0
    %562 = vmatprep.subr.mxu0 0.0
    %563 = vmatpush1.xpose.msra.mxu0 0.0
    %564 = vmatprep.subr.mxu0 0.0
    %565 = vmatpush1.xpose.msra.mxu0 0.0
    %566 = vmatprep.subr.mxu0 0.0
    %567 = vmatpush1.xpose.msra.mxu0 0.0
    %568 = vmatprep.subr.mxu0 0.0
    %569 = vmatpush1.xpose.msra.mxu0 0.0
    %570 = vmatprep.subr.mxu0 0.0
    %571 = vmatpush1.xpose.msra.mxu0 0.0
    %572 = vmatprep.subr.mxu0 0.0
    %573 = vmatpush1.xpose.msra.mxu0 0.0
    %574 = vmatprep.subr.mxu0 0.0
    %575 = vmatpush1.xpose.msra.mxu0 0.0
    %576 = vmatprep.subr.mxu0 0.0
    %577 = vmatpush1.xpose.msra.mxu0 0.0
    %578 = vmatprep.subr.mxu0 0.0
    %579 = vmatpush1.xpose.msra.mxu0 0.0
    %580 = vmatprep.subr.mxu0 0.0
    %581 = vmatpush1.xpose.msra.mxu0 0.0
    %582 = vmatprep.subr.mxu0 0.0
    %583 = vmatpush1.xpose.msra.mxu0 0.0
    %584 = vmatprep.subr.mxu0 0.0
    %585 = vmatpush1.xpose.msra.mxu0 0.0
    %586 = vmatprep.subr.mxu0 0.0
    %587 = vmatpush1.xpose.msra.mxu0 0.0
    %588 = vmatprep.subr.mxu0 0.0
    %589 = vmatpush1.xpose.msra.mxu0 %v556
    %590 = vmatprep.subr.mxu0 0.0
    %591 = vmatpush2.xpose.msra.mxu0 0.0
    %592 = vmatprep.subr.mxu0 0.0
    %593 = vmatpush2.xpose.msra.mxu0 0.0
    %594 = vmatprep.subr.mxu0 0.0
    %595 = vmatpush2.xpose.msra.mxu0 0.0
    %596 = vmatprep.subr.mxu0 0.0
    %597 = vmatpush2.xpose.msra.mxu0 0.0
    %598 = vmatprep.subr.mxu0 0.0
    %599 = vmatpush2.xpose.msra.mxu0 0.0
    %600 = vmatprep.subr.mxu0 0.0
    %601 = vmatpush2.xpose.msra.mxu0 0.0
    %602 = vmatprep.subr.mxu0 0.0
    %603 = vmatpush2.xpose.msra.mxu0 0.0
    %604 = vmatprep.subr.mxu0 0.0
    %605 = vmatpush2.xpose.msra.mxu0 0.0
    %606 = vmatprep.subr.mxu0 0.0
    %607 = vmatpush2.xpose.msra.mxu0 0.0
    %608 = vmatprep.subr.mxu0 0.0
    %609 = vmatpush2.xpose.msra.mxu0 0.0
    %610 = vmatprep.subr.mxu0 0.0
    %611 = vmatpush2.xpose.msra.mxu0 0.0
    %612 = vmatprep.subr.mxu0 0.0
    %613 = vmatpush2.xpose.msra.mxu0 0.0
    %614 = vmatprep.subr.mxu0 0.0
    %615 = vmatpush2.xpose.msra.mxu0 0.0
    %616 = vmatprep.subr.mxu0 0.0
    %617 = vmatpush2.xpose.msra.mxu0 0.0
    %618 = vmatprep.subr.mxu0 0.0
    %619 = vmatpush2.xpose.msra.mxu0 0.0
    %620 = vmatprep.subr.mxu0 0.0
    %621 = vmatpush2.xpose.msra.mxu0 0.0
    %622 = vmatprep.mubr.f32.mxu0 0.0
    %623 = vmatmul.mubr.f32.gmra.mxu0 %v553
    %v624 = vpop.f32.mrf.mxu0
    %v625 = vadd.f32 0.0, %v624
    %v626 = vpop.f32.mrf.mxu0
    %627 = vdwg.mxu0
    %v628 = vsel %vm177, %v109, 0
    %v631 = vsel %vm177, %v167, 0
    %633 = vmatprep.subr.mxu0 0.0
    %634 = vmatpush1.xpose.msra.mxu0 0.0
    %635 = vmatprep.subr.mxu0 0.0
    %636 = vmatpush1.xpose.msra.mxu0 0.0
    %637 = vmatprep.subr.mxu0 0.0
    %638 = vmatpush1.xpose.msra.mxu0 0.0
    %639 = vmatprep.subr.mxu0 0.0
    %640 = vmatpush1.xpose.msra.mxu0 0.0
    %641 = vmatprep.subr.mxu0 0.0
    %642 = vmatpush1.xpose.msra.mxu0 0.0
    %643 = vmatprep.subr.mxu0 0.0
    %644 = vmatpush1.xpose.msra.mxu0 0.0
    %645 = vmatprep.subr.mxu0 0.0
    %646 = vmatpush1.xpose.msra.mxu0 0.0
    %647 = vmatprep.subr.mxu0 0.0
    %648 = vmatpush1.xpose.msra.mxu0 0.0
    %649 = vmatprep.subr.mxu0 0.0
    %650 = vmatpush1.xpose.msra.mxu0 0.0
    %651 = vmatprep.subr.mxu0 0.0
    %652 = vmatpush1.xpose.msra.mxu0 0.0
    %653 = vmatprep.subr.mxu0 0.0
    %654 = vmatpush1.xpose.msra.mxu0 0.0
    %655 = vmatprep.subr.mxu0 0.0
    %656 = vmatpush1.xpose.msra.mxu0 0.0
    %657 = vmatprep.subr.mxu0 0.0
    %658 = vmatpush1.xpose.msra.mxu0 0.0
    %659 = vmatprep.subr.mxu0 0.0
    %660 = vmatpush1.xpose.msra.mxu0 0.0
    %661 = vmatprep.subr.mxu0 0.0
    %662 = vmatpush1.xpose.msra.mxu0 0.0
    %663 = vmatprep.subr.mxu0 0.0
    %664 = vmatpush1.xpose.msra.mxu0 %v631
    %665 = vmatprep.subr.mxu0 0.0
    %666 = vmatpush2.xpose.msra.mxu0 0.0
    %667 = vmatprep.subr.mxu0 0.0
    %668 = vmatpush2.xpose.msra.mxu0 0.0
    %669 = vmatprep.subr.mxu0 0.0
    %670 = vmatpush2.xpose.msra.mxu0 0.0
    %671 = vmatprep.subr.mxu0 0.0
    %672 = vmatpush2.xpose.msra.mxu0 0.0
    %673 = vmatprep.subr.mxu0 0.0
    %674 = vmatpush2.xpose.msra.mxu0 0.0
    %675 = vmatprep.subr.mxu0 0.0
    %676 = vmatpush2.xpose.msra.mxu0 0.0
    %677 = vmatprep.subr.mxu0 0.0
    %678 = vmatpush2.xpose.msra.mxu0 0.0
    %679 = vmatprep.subr.mxu0 0.0
    %680 = vmatpush2.xpose.msra.mxu0 0.0
    %681 = vmatprep.subr.mxu0 0.0
    %682 = vmatpush2.xpose.msra.mxu0 0.0
    %683 = vmatprep.subr.mxu0 0.0
    %684 = vmatpush2.xpose.msra.mxu0 0.0
    %685 = vmatprep.subr.mxu0 0.0
    %686 = vmatpush2.xpose.msra.mxu0 0.0
    %687 = vmatprep.subr.mxu0 0.0
    %688 = vmatpush2.xpose.msra.mxu0 0.0
    %689 = vmatprep.subr.mxu0 0.0
    %690 = vmatpush2.xpose.msra.mxu0 0.0
    %691 = vmatprep.subr.mxu0 0.0
    %692 = vmatpush2.xpose.msra.mxu0 0.0
    %693 = vmatprep.subr.mxu0 0.0
    %694 = vmatpush2.xpose.msra.mxu0 0.0
    %695 = vmatprep.subr.mxu0 0.0
    %696 = vmatpush2.xpose.msra.mxu0 0.0
    %697 = vmatprep.mubr.f32.mxu0 0.0
    %698 = vmatmul.mubr.f32.gmra.mxu0 %v628
    %v699 = vpop.f32.mrf.mxu0
    %v700 = vadd.f32 0.0, %v699
    %v701 = vpop.f32.mrf.mxu0
    %702 = vdwg.mxu0
    %v703 = vsel %vm177, %v111, 0
    %v706 = vsel %vm177, %v168, 0
    %708 = vmatprep.subr.mxu0 0.0
    %709 = vmatpush1.xpose.msra.mxu0 0.0
    %710 = vmatprep.subr.mxu0 0.0
    %711 = vmatpush1.xpose.msra.mxu0 0.0
    %712 = vmatprep.subr.mxu0 0.0
    %713 = vmatpush1.xpose.msra.mxu0 0.0
    %714 = vmatprep.subr.mxu0 0.0
    %715 = vmatpush1.xpose.msra.mxu0 0.0
    %716 = vmatprep.subr.mxu0 0.0
    %717 = vmatpush1.xpose.msra.mxu0 0.0
    %718 = vmatprep.subr.mxu0 0.0
    %719 = vmatpush1.xpose.msra.mxu0 0.0
    %720 = vmatprep.subr.mxu0 0.0
    %721 = vmatpush1.xpose.msra.mxu0 0.0
    %722 = vmatprep.subr.mxu0 0.0
    %723 = vmatpush1.xpose.msra.mxu0 0.0
    %724 = vmatprep.subr.mxu0 0.0
    %725 = vmatpush1.xpose.msra.mxu0 0.0
    %726 = vmatprep.subr.mxu0 0.0
    %727 = vmatpush1.xpose.msra.mxu0 0.0
    %728 = vmatprep.subr.mxu0 0.0
    %729 = vmatpush1.xpose.msra.mxu0 0.0
    %730 = vmatprep.subr.mxu0 0.0
    %731 = vmatpush1.xpose.msra.mxu0 0.0
    %732 = vmatprep.subr.mxu0 0.0
    %733 = vmatpush1.xpose.msra.mxu0 0.0
    %734 = vmatprep.subr.mxu0 0.0
    %735 = vmatpush1.xpose.msra.mxu0 0.0
    %736 = vmatprep.subr.mxu0 0.0
    %737 = vmatpush1.xpose.msra.mxu0 0.0
    %738 = vmatprep.subr.mxu0 0.0
    %739 = vmatpush1.xpose.msra.mxu0 %v706
    %740 = vmatprep.subr.mxu0 0.0
    %741 = vmatpush2.xpose.msra.mxu0 0.0
    %742 = vmatprep.subr.mxu0 0.0
    %743 = vmatpush2.xpose.msra.mxu0 0.0
    %744 = vmatprep.subr.mxu0 0.0
    %745 = vmatpush2.xpose.msra.mxu0 0.0
    %746 = vmatprep.subr.mxu0 0.0
    %747 = vmatpush2.xpose.msra.mxu0 0.0
    %748 = vmatprep.subr.mxu0 0.0
    %749 = vmatpush2.xpose.msra.mxu0 0.0
    %750 = vmatprep.subr.mxu0 0.0
    %751 = vmatpush2.xpose.msra.mxu0 0.0
    %752 = vmatprep.subr.mxu0 0.0
    %753 = vmatpush2.xpose.msra.mxu0 0.0
    %754 = vmatprep.subr.mxu0 0.0
    %755 = vmatpush2.xpose.msra.mxu0 0.0
    %756 = vmatprep.subr.mxu0 0.0
    %757 = vmatpush2.xpose.msra.mxu0 0.0
    %758 = vmatprep.subr.mxu0 0.0
    %759 = vmatpush2.xpose.msra.mxu0 0.0
    %760 = vmatprep.subr.mxu0 0.0
    %761 = vmatpush2.xpose.msra.mxu0 0.0
    %762 = vmatprep.subr.mxu0 0.0
    %763 = vmatpush2.xpose.msra.mxu0 0.0
    %764 = vmatprep.subr.mxu0 0.0
    %765 = vmatpush2.xpose.msra.mxu0 0.0
    %766 = vmatprep.subr.mxu0 0.0
    %767 = vmatpush2.xpose.msra.mxu0 0.0
    %768 = vmatprep.subr.mxu0 0.0
    %769 = vmatpush2.xpose.msra.mxu0 0.0
    %770 = vmatprep.subr.mxu0 0.0
    %771 = vmatpush2.xpose.msra.mxu0 0.0
    %772 = vmatprep.mubr.f32.mxu0 0.0
    %773 = vmatmul.mubr.f32.gmra.mxu0 %v703
    %v774 = vpop.f32.mrf.mxu0
    %v775 = vadd.f32 0.0, %v774
    %v776 = vpop.f32.mrf.mxu0
    %777 = vdwg.mxu0
    %v778 = vsel %vm177, %v135, 0
    %v781 = vsel %vm177, %v169, 0
    %783 = vmatprep.subr.mxu0 0.0
    %784 = vmatpush1.xpose.msra.mxu0 0.0
    %785 = vmatprep.subr.mxu0 0.0
    %786 = vmatpush1.xpose.msra.mxu0 0.0
    %787 = vmatprep.subr.mxu0 0.0
    %788 = vmatpush1.xpose.msra.mxu0 0.0
    %789 = vmatprep.subr.mxu0 0.0
    %790 = vmatpush1.xpose.msra.mxu0 0.0
    %791 = vmatprep.subr.mxu0 0.0
    %792 = vmatpush1.xpose.msra.mxu0 0.0
    %793 = vmatprep.subr.mxu0 0.0
    %794 = vmatpush1.xpose.msra.mxu0 0.0
    %795 = vmatprep.subr.mxu0 0.0
    %796 = vmatpush1.xpose.msra.mxu0 0.0
    %797 = vmatprep.subr.mxu0 0.0
    %798 = vmatpush1.xpose.msra.mxu0 0.0
    %799 = vmatprep.subr.mxu0 0.0
    %800 = vmatpush1.xpose.msra.mxu0 0.0
    %801 = vmatprep.subr.mxu0 0.0
    %802 = vmatpush1.xpose.msra.mxu0 0.0
    %803 = vmatprep.subr.mxu0 0.0
    %804 = vmatpush1.xpose.msra.mxu0 0.0
    %805 = vmatprep.subr.mxu0 0.0
    %806 = vmatpush1.xpose.msra.mxu0 0.0
    %807 = vmatprep.subr.mxu0 0.0
    %808 = vmatpush1.xpose.msra.mxu0 0.0
    %809 = vmatprep.subr.mxu0 0.0
    %810 = vmatpush1.xpose.msra.mxu0 0.0
    %811 = vmatprep.subr.mxu0 0.0
    %812 = vmatpush1.xpose.msra.mxu0 0.0
    %813 = vmatprep.subr.mxu0 0.0
    %814 = vmatpush1.xpose.msra.mxu0 %v781
    %815 = vmatprep.subr.mxu0 0.0
    %816 = vmatpush2.xpose.msra.mxu0 0.0
    %817 = vmatprep.subr.mxu0 0.0
    %818 = vmatpush2.xpose.msra.mxu0 0.0
    %819 = vmatprep.subr.mxu0 0.0
    %820 = vmatpush2.xpose.msra.mxu0 0.0
    %821 = vmatprep.subr.mxu0 0.0
    %822 = vmatpush2.xpose.msra.mxu0 0.0
    %823 = vmatprep.subr.mxu0 0.0
    %824 = vmatpush2.xpose.msra.mxu0 0.0
    %825 = vmatprep.subr.mxu0 0.0
    %826 = vmatpush2.xpose.msra.mxu0 0.0
    %827 = vmatprep.subr.mxu0 0.0
    %828 = vmatpush2.xpose.msra.mxu0 0.0
    %829 = vmatprep.subr.mxu0 0.0
    %830 = vmatpush2.xpose.msra.mxu0 0.0
    %831 = vmatprep.subr.mxu0 0.0
    %832 = vmatpush2.xpose.msra.mxu0 0.0
    %833 = vmatprep.subr.mxu0 0.0
    %834 = vmatpush2.xpose.msra.mxu0 0.0
    %835 = vmatprep.subr.mxu0 0.0
    %836 = vmatpush2.xpose.msra.mxu0 0.0
    %837 = vmatprep.subr.mxu0 0.0
    %838 = vmatpush2.xpose.msra.mxu0 0.0
    %839 = vmatprep.subr.mxu0 0.0
    %840 = vmatpush2.xpose.msra.mxu0 0.0
    %841 = vmatprep.subr.mxu0 0.0
    %842 = vmatpush2.xpose.msra.mxu0 0.0
    %843 = vmatprep.subr.mxu0 0.0
    %844 = vmatpush2.xpose.msra.mxu0 0.0
    %845 = vmatprep.subr.mxu0 0.0
    %846 = vmatpush2.xpose.msra.mxu0 0.0
    %847 = vmatprep.mubr.f32.mxu0 0.0
    %848 = vmatmul.mubr.f32.gmra.mxu0 %v778
    %v849 = vpop.f32.mrf.mxu0
    %v850 = vadd.f32 0.0, %v849
    %v851 = vpop.f32.mrf.mxu0
    %852 = vdwg.mxu0
    %v853 = vsel %vm177, %v149, 0
    %v856 = vsel %vm177, %v170, 0
    %858 = vmatprep.subr.mxu0 0.0
    %859 = vmatpush1.xpose.msra.mxu0 0.0
    %860 = vmatprep.subr.mxu0 0.0
    %861 = vmatpush1.xpose.msra.mxu0 0.0
    %862 = vmatprep.subr.mxu0 0.0
    %863 = vmatpush1.xpose.msra.mxu0 0.0
    %864 = vmatprep.subr.mxu0 0.0
    %865 = vmatpush1.xpose.msra.mxu0 0.0
    %866 = vmatprep.subr.mxu0 0.0
    %867 = vmatpush1.xpose.msra.mxu0 0.0
    %868 = vmatprep.subr.mxu0 0.0
    %869 = vmatpush1.xpose.msra.mxu0 0.0
    %870 = vmatprep.subr.mxu0 0.0
    %871 = vmatpush1.xpose.msra.mxu0 0.0
    %872 = vmatprep.subr.mxu0 0.0
    %873 = vmatpush1.xpose.msra.mxu0 0.0
    %874 = vmatprep.subr.mxu0 0.0
    %875 = vmatpush1.xpose.msra.mxu0 0.0
    %876 = vmatprep.subr.mxu0 0.0
    %877 = vmatpush1.xpose.msra.mxu0 0.0
    %878 = vmatprep.subr.mxu0 0.0
    %879 = vmatpush1.xpose.msra.mxu0 0.0
    %880 = vmatprep.subr.mxu0 0.0
    %881 = vmatpush1.xpose.msra.mxu0 0.0
    %882 = vmatprep.subr.mxu0 0.0
    %883 = vmatpush1.xpose.msra.mxu0 0.0
    %884 = vmatprep.subr.mxu0 0.0
    %885 = vmatpush1.xpose.msra.mxu0 0.0
    %886 = vmatprep.subr.mxu0 0.0
    %887 = vmatpush1.xpose.msra.mxu0 0.0
    %888 = vmatprep.subr.mxu0 0.0
    %889 = vmatpush1.xpose.msra.mxu0 %v856
    %890 = vmatprep.subr.mxu0 0.0
    %891 = vmatpush2.xpose.msra.mxu0 0.0
    %892 = vmatprep.subr.mxu0 0.0
    %893 = vmatpush2.xpose.msra.mxu0 0.0
    %894 = vmatprep.subr.mxu0 0.0
    %895 = vmatpush2.xpose.msra.mxu0 0.0
    %896 = vmatprep.subr.mxu0 0.0
    %897 = vmatpush2.xpose.msra.mxu0 0.0
    %898 = vmatprep.subr.mxu0 0.0
    %899 = vmatpush2.xpose.msra.mxu0 0.0
    %900 = vmatprep.subr.mxu0 0.0
    %901 = vmatpush2.xpose.msra.mxu0 0.0
    %902 = vmatprep.subr.mxu0 0.0
    %903 = vmatpush2.xpose.msra.mxu0 0.0
    %904 = vmatprep.subr.mxu0 0.0
    %905 = vmatpush2.xpose.msra.mxu0 0.0
    %906 = vmatprep.subr.mxu0 0.0
    %907 = vmatpush2.xpose.msra.mxu0 0.0
    %908 = vmatprep.subr.mxu0 0.0
    %909 = vmatpush2.xpose.msra.mxu0 0.0
    %910 = vmatprep.subr.mxu0 0.0
    %911 = vmatpush2.xpose.msra.mxu0 0.0
    %912 = vmatprep.subr.mxu0 0.0
    %913 = vmatpush2.xpose.msra.mxu0 0.0
    %914 = vmatprep.subr.mxu0 0.0
    %915 = vmatpush2.xpose.msra.mxu0 0.0
    %916 = vmatprep.subr.mxu0 0.0
    %917 = vmatpush2.xpose.msra.mxu0 0.0
    %918 = vmatprep.subr.mxu0 0.0
    %919 = vmatpush2.xpose.msra.mxu0 0.0
    %920 = vmatprep.subr.mxu0 0.0
    %921 = vmatpush2.xpose.msra.mxu0 0.0
    %922 = vmatprep.mubr.f32.mxu0 0.0
    %923 = vmatmul.mubr.f32.gmra.mxu0 %v853
    %v924 = vpop.f32.mrf.mxu0
    %v925 = vadd.f32 0.0, %v924
    %v926 = vpop.f32.mrf.mxu0
    %927 = vdwg.mxu0
    %v928 = vsel %vm177, %v157, 0
    %v931 = vsel %vm177, %v171, 0
    %933 = vmatprep.subr.mxu0 0.0
    %934 = vmatpush1.xpose.msra.mxu0 0.0
    %935 = vmatprep.subr.mxu0 0.0
    %936 = vmatpush1.xpose.msra.mxu0 0.0
    %937 = vmatprep.subr.mxu0 0.0
    %938 = vmatpush1.xpose.msra.mxu0 0.0
    %939 = vmatprep.subr.mxu0 0.0
    %940 = vmatpush1.xpose.msra.mxu0 0.0
    %941 = vmatprep.subr.mxu0 0.0
    %942 = vmatpush1.xpose.msra.mxu0 0.0
    %943 = vmatprep.subr.mxu0 0.0
    %944 = vmatpush1.xpose.msra.mxu0 0.0
    %945 = vmatprep.subr.mxu0 0.0
    %946 = vmatpush1.xpose.msra.mxu0 0.0
    %947 = vmatprep.subr.mxu0 0.0
    %948 = vmatpush1.xpose.msra.mxu0 0.0
    %949 = vmatprep.subr.mxu0 0.0
    %950 = vmatpush1.xpose.msra.mxu0 0.0
    %951 = vmatprep.subr.mxu0 0.0
    %952 = vmatpush1.xpose.msra.mxu0 0.0
    %953 = vmatprep.subr.mxu0 0.0
    %954 = vmatpush1.xpose.msra.mxu0 0.0
    %955 = vmatprep.subr.mxu0 0.0
    %956 = vmatpush1.xpose.msra.mxu0 0.0
    %957 = vmatprep.subr.mxu0 0.0
    %958 = vmatpush1.xpose.msra.mxu0 0.0
    %959 = vmatprep.subr.mxu0 0.0
    %960 = vmatpush1.xpose.msra.mxu0 0.0
    %961 = vmatprep.subr.mxu0 0.0
    %962 = vmatpush1.xpose.msra.mxu0 0.0
    %963 = vmatprep.subr.mxu0 0.0
    %964 = vmatpush1.xpose.msra.mxu0 %v931
    %965 = vmatprep.subr.mxu0 0.0
    %966 = vmatpush2.xpose.msra.mxu0 0.0
    %967 = vmatprep.subr.mxu0 0.0
    %968 = vmatpush2.xpose.msra.mxu0 0.0
    %969 = vmatprep.subr.mxu0 0.0
    %970 = vmatpush2.xpose.msra.mxu0 0.0
    %971 = vmatprep.subr.mxu0 0.0
    %972 = vmatpush2.xpose.msra.mxu0 0.0
    %973 = vmatprep.subr.mxu0 0.0
    %974 = vmatpush2.xpose.msra.mxu0 0.0
    %975 = vmatprep.subr.mxu0 0.0
    %976 = vmatpush2.xpose.msra.mxu0 0.0
    %977 = vmatprep.subr.mxu0 0.0
    %978 = vmatpush2.xpose.msra.mxu0 0.0
    %979 = vmatprep.subr.mxu0 0.0
    %980 = vmatpush2.xpose.msra.mxu0 0.0
    %981 = vmatprep.subr.mxu0 0.0
    %982 = vmatpush2.xpose.msra.mxu0 0.0
    %983 = vmatprep.subr.mxu0 0.0
    %984 = vmatpush2.xpose.msra.mxu0 0.0
    %985 = vmatprep.subr.mxu0 0.0
    %986 = vmatpush2.xpose.msra.mxu0 0.0
    %987 = vmatprep.subr.mxu0 0.0
    %988 = vmatpush2.xpose.msra.mxu0 0.0
    %989 = vmatprep.subr.mxu0 0.0
    %990 = vmatpush2.xpose.msra.mxu0 0.0
    %991 = vmatprep.subr.mxu0 0.0
    %992 = vmatpush2.xpose.msra.mxu0 0.0
    %993 = vmatprep.subr.mxu0 0.0
    %994 = vmatpush2.xpose.msra.mxu0 0.0
    %995 = vmatprep.subr.mxu0 0.0
    %996 = vmatpush2.xpose.msra.mxu0 0.0
    %997 = vmatprep.mubr.f32.mxu0 0.0
    %998 = vmatmul.mubr.f32.gmra.mxu0 %v928
    %v999 = vpop.f32.mrf.mxu0
    %v1000 = vadd.f32 0.0, %v999
    %v1001 = vpop.f32.mrf.mxu0
    %1002 = vdwg.mxu0
    %v1003 = vsel %vm177, %v159, 0
    %v1006 = vsel %vm177, %v172, 0
    %1008 = vmatprep.subr.mxu0 0.0
    %1009 = vmatpush1.xpose.msra.mxu0 0.0
    %1010 = vmatprep.subr.mxu0 0.0
    %1011 = vmatpush1.xpose.msra.mxu0 0.0
    %1012 = vmatprep.subr.mxu0 0.0
    %1013 = vmatpush1.xpose.msra.mxu0 0.0
    %1014 = vmatprep.subr.mxu0 0.0
    %1015 = vmatpush1.xpose.msra.mxu0 0.0
    %1016 = vmatprep.subr.mxu0 0.0
    %1017 = vmatpush1.xpose.msra.mxu0 0.0
    %1018 = vmatprep.subr.mxu0 0.0
    %1019 = vmatpush1.xpose.msra.mxu0 0.0
    %1020 = vmatprep.subr.mxu0 0.0
    %1021 = vmatpush1.xpose.msra.mxu0 0.0
    %1022 = vmatprep.subr.mxu0 0.0
    %1023 = vmatpush1.xpose.msra.mxu0 0.0
    %1024 = vmatprep.subr.mxu0 0.0
    %1025 = vmatpush1.xpose.msra.mxu0 0.0
    %1026 = vmatprep.subr.mxu0 0.0
    %1027 = vmatpush1.xpose.msra.mxu0 0.0
    %1028 = vmatprep.subr.mxu0 0.0
    %1029 = vmatpush1.xpose.msra.mxu0 0.0
    %1030 = vmatprep.subr.mxu0 0.0
    %1031 = vmatpush1.xpose.msra.mxu0 0.0
    %1032 = vmatprep.subr.mxu0 0.0
    %1033 = vmatpush1.xpose.msra.mxu0 0.0
    %1034 = vmatprep.subr.mxu0 0.0
    %1035 = vmatpush1.xpose.msra.mxu0 0.0
    %1036 = vmatprep.subr.mxu0 0.0
    %1037 = vmatpush1.xpose.msra.mxu0 0.0
    %1038 = vmatprep.subr.mxu0 0.0
    %1039 = vmatpush1.xpose.msra.mxu0 %v1006
    %1040 = vmatprep.subr.mxu0 0.0
    %1041 = vmatpush2.xpose.msra.mxu0 0.0
    %1042 = vmatprep.subr.mxu0 0.0
    %1043 = vmatpush2.xpose.msra.mxu0 0.0
    %1044 = vmatprep.subr.mxu0 0.0
    %1045 = vmatpush2.xpose.msra.mxu0 0.0
    %1046 = vmatprep.subr.mxu0 0.0
    %1047 = vmatpush2.xpose.msra.mxu0 0.0
    %1048 = vmatprep.subr.mxu0 0.0
    %1049 = vmatpush2.xpose.msra.mxu0 0.0
    %1050 = vmatprep.subr.mxu0 0.0
    %1051 = vmatpush2.xpose.msra.mxu0 0.0
    %1052 = vmatprep.subr.mxu0 0.0
    %1053 = vmatpush2.xpose.msra.mxu0 0.0
    %1054 = vmatprep.subr.mxu0 0.0
    %1055 = vmatpush2.xpose.msra.mxu0 0.0
    %1056 = vmatprep.subr.mxu0 0.0
    %1057 = vmatpush2.xpose.msra.mxu0 0.0
    %1058 = vmatprep.subr.mxu0 0.0
    %1059 = vmatpush2.xpose.msra.mxu0 0.0
    %1060 = vmatprep.subr.mxu0 0.0
    %1061 = vmatpush2.xpose.msra.mxu0 0.0
    %1062 = vmatprep.subr.mxu0 0.0
    %1063 = vmatpush2.xpose.msra.mxu0 0.0
    %1064 = vmatprep.subr.mxu0 0.0
    %1065 = vmatpush2.xpose.msra.mxu0 0.0
    %1066 = vmatprep.subr.mxu0 0.0
    %1067 = vmatpush2.xpose.msra.mxu0 0.0
    %1068 = vmatprep.subr.mxu0 0.0
    %1069 = vmatpush2.xpose.msra.mxu0 0.0
    %1070 = vmatprep.subr.mxu0 0.0
    %1071 = vmatpush2.xpose.msra.mxu0 0.0
    %1072 = vmatprep.mubr.f32.mxu0 0.0
    %1073 = vmatmul.mubr.f32.gmra.mxu0 %v1003
    %v1074 = vpop.f32.mrf.mxu0
    %v1075 = vadd.f32 0.0, %v1074
    %v1076 = vpop.f32.mrf.mxu0
    %1077 = vdwg.mxu0
    %v1078 = vsel %vm177, %v142, 0
    %v1081 = vsel %vm177, %v173, 0
    %1083 = vmatprep.subr.mxu0 0.0
    %1084 = vmatpush1.xpose.msra.mxu0 0.0
    %1085 = vmatprep.subr.mxu0 0.0
    %1086 = vmatpush1.xpose.msra.mxu0 0.0
    %1087 = vmatprep.subr.mxu0 0.0
    %1088 = vmatpush1.xpose.msra.mxu0 0.0
    %1089 = vmatprep.subr.mxu0 0.0
    %1090 = vmatpush1.xpose.msra.mxu0 0.0
    %1091 = vmatprep.subr.mxu0 0.0
    %1092 = vmatpush1.xpose.msra.mxu0 0.0
    %1093 = vmatprep.subr.mxu0 0.0
    %1094 = vmatpush1.xpose.msra.mxu0 0.0
    %1095 = vmatprep.subr.mxu0 0.0
    %1096 = vmatpush1.xpose.msra.mxu0 0.0
    %1097 = vmatprep.subr.mxu0 0.0
    %1098 = vmatpush1.xpose.msra.mxu0 0.0
    %1099 = vmatprep.subr.mxu0 0.0
    %1100 = vmatpush1.xpose.msra.mxu0 0.0
    %1101 = vmatprep.subr.mxu0 0.0
    %1102 = vmatpush1.xpose.msra.mxu0 0.0
    %1103 = vmatprep.subr.mxu0 0.0
    %1104 = vmatpush1.xpose.msra.mxu0 0.0
    %1105 = vmatprep.subr.mxu0 0.0
    %1106 = vmatpush1.xpose.msra.mxu0 0.0
    %1107 = vmatprep.subr.mxu0 0.0
    %1108 = vmatpush1.xpose.msra.mxu0 0.0
    %1109 = vmatprep.subr.mxu0 0.0
    %1110 = vmatpush1.xpose.msra.mxu0 0.0
    %1111 = vmatprep.subr.mxu0 0.0
    %1112 = vmatpush1.xpose.msra.mxu0 0.0
    %1113 = vmatprep.subr.mxu0 0.0
    %1114 = vmatpush1.xpose.msra.mxu0 %v1081
    %1115 = vmatprep.subr.mxu0 0.0
    %1116 = vmatpush2.xpose.msra.mxu0 0.0
    %1117 = vmatprep.subr.mxu0 0.0
    %1118 = vmatpush2.xpose.msra.mxu0 0.0
    %1119 = vmatprep.subr.mxu0 0.0
    %1120 = vmatpush2.xpose.msra.mxu0 0.0
    %1121 = vmatprep.subr.mxu0 0.0
    %1122 = vmatpush2.xpose.msra.mxu0 0.0
    %1123 = vmatprep.subr.mxu0 0.0
    %1124 = vmatpush2.xpose.msra.mxu0 0.0
    %1125 = vmatprep.subr.mxu0 0.0
    %1126 = vmatpush2.xpose.msra.mxu0 0.0
    %1127 = vmatprep.subr.mxu0 0.0
    %1128 = vmatpush2.xpose.msra.mxu0 0.0
    %1129 = vmatprep.subr.mxu0 0.0
    %1130 = vmatpush2.xpose.msra.mxu0 0.0
    %1131 = vmatprep.subr.mxu0 0.0
    %1132 = vmatpush2.xpose.msra.mxu0 0.0
    %1133 = vmatprep.subr.mxu0 0.0
    %1134 = vmatpush2.xpose.msra.mxu0 0.0
    %1135 = vmatprep.subr.mxu0 0.0
    %1136 = vmatpush2.xpose.msra.mxu0 0.0
    %1137 = vmatprep.subr.mxu0 0.0
    %1138 = vmatpush2.xpose.msra.mxu0 0.0
    %1139 = vmatprep.subr.mxu0 0.0
    %1140 = vmatpush2.xpose.msra.mxu0 0.0
    %1141 = vmatprep.subr.mxu0 0.0
    %1142 = vmatpush2.xpose.msra.mxu0 0.0
    %1143 = vmatprep.subr.mxu0 0.0
    %1144 = vmatpush2.xpose.msra.mxu0 0.0
    %1145 = vmatprep.subr.mxu0 0.0
    %1146 = vmatpush2.xpose.msra.mxu0 0.0
    %1147 = vmatprep.mubr.f32.mxu0 0.0
    %1148 = vmatmul.mubr.f32.gmra.mxu0 %v1078
    %v1149 = vpop.f32.mrf.mxu0
    %v1150 = vadd.f32 0.0, %v1149
    %v1151 = vpop.f32.mrf.mxu0
    %1152 = vdwg.mxu0
    %v1153 = vsel %vm177, %v156, 0
    %v1156 = vsel %vm177, %v174, 0
    %1158 = vmatprep.subr.mxu0 0.0
    %1159 = vmatpush1.xpose.msra.mxu0 0.0
    %1160 = vmatprep.subr.mxu0 0.0
    %1161 = vmatpush1.xpose.msra.mxu0 0.0
    %1162 = vmatprep.subr.mxu0 0.0
    %1163 = vmatpush1.xpose.msra.mxu0 0.0
    %1164 = vmatprep.subr.mxu0 0.0
    %1165 = vmatpush1.xpose.msra.mxu0 0.0
    %1166 = vmatprep.subr.mxu0 0.0
    %1167 = vmatpush1.xpose.msra.mxu0 0.0
    %1168 = vmatprep.subr.mxu0 0.0
    %1169 = vmatpush1.xpose.msra.mxu0 0.0
    %1170 = vmatprep.subr.mxu0 0.0
    %1171 = vmatpush1.xpose.msra.mxu0 0.0
    %1172 = vmatprep.subr.mxu0 0.0
    %1173 = vmatpush1.xpose.msra.mxu0 0.0
    %1174 = vmatprep.subr.mxu0 0.0
    %1175 = vmatpush1.xpose.msra.mxu0 0.0
    %1176 = vmatprep.subr.mxu0 0.0
    %1177 = vmatpush1.xpose.msra.mxu0 0.0
    %1178 = vmatprep.subr.mxu0 0.0
    %1179 = vmatpush1.xpose.msra.mxu0 0.0
    %1180 = vmatprep.subr.mxu0 0.0
    %1181 = vmatpush1.xpose.msra.mxu0 0.0
    %1182 = vmatprep.subr.mxu0 0.0
    %1183 = vmatpush1.xpose.msra.mxu0 0.0
    %1184 = vmatprep.subr.mxu0 0.0
    %1185 = vmatpush1.xpose.msra.mxu0 0.0
    %1186 = vmatprep.subr.mxu0 0.0
    %1187 = vmatpush1.xpose.msra.mxu0 0.0
    %1188 = vmatprep.subr.mxu0 0.0
    %1189 = vmatpush1.xpose.msra.mxu0 %v1156
    %1190 = vmatprep.subr.mxu0 0.0
    %1191 = vmatpush2.xpose.msra.mxu0 0.0
    %1192 = vmatprep.subr.mxu0 0.0
    %1193 = vmatpush2.xpose.msra.mxu0 0.0
    %1194 = vmatprep.subr.mxu0 0.0
    %1195 = vmatpush2.xpose.msra.mxu0 0.0
    %1196 = vmatprep.subr.mxu0 0.0
    %1197 = vmatpush2.xpose.msra.mxu0 0.0
    %1198 = vmatprep.subr.mxu0 0.0
    %1199 = vmatpush2.xpose.msra.mxu0 0.0
    %1200 = vmatprep.subr.mxu0 0.0
    %1201 = vmatpush2.xpose.msra.mxu0 0.0
    %1202 = vmatprep.subr.mxu0 0.0
    %1203 = vmatpush2.xpose.msra.mxu0 0.0
    %1204 = vmatprep.subr.mxu0 0.0
    %1205 = vmatpush2.xpose.msra.mxu0 0.0
    %1206 = vmatprep.subr.mxu0 0.0
    %1207 = vmatpush2.xpose.msra.mxu0 0.0
    %1208 = vmatprep.subr.mxu0 0.0
    %1209 = vmatpush2.xpose.msra.mxu0 0.0
    %1210 = vmatprep.subr.mxu0 0.0
    %1211 = vmatpush2.xpose.msra.mxu0 0.0
    %1212 = vmatprep.subr.mxu0 0.0
    %1213 = vmatpush2.xpose.msra.mxu0 0.0
    %1214 = vmatprep.subr.mxu0 0.0
    %1215 = vmatpush2.xpose.msra.mxu0 0.0
    %1216 = vmatprep.subr.mxu0 0.0
    %1217 = vmatpush2.xpose.msra.mxu0 0.0
    %1218 = vmatprep.subr.mxu0 0.0
    %1219 = vmatpush2.xpose.msra.mxu0 0.0
    %1220 = vmatprep.subr.mxu0 0.0
    %1221 = vmatpush2.xpose.msra.mxu0 0.0
    %1222 = vmatprep.mubr.f32.mxu0 0.0
    %1223 = vmatmul.mubr.f32.gmra.mxu0 %v1153
    %v1224 = vpop.f32.mrf.mxu0
    %v1225 = vadd.f32 0.0, %v1224
    %v1226 = vpop.f32.mrf.mxu0
    %1227 = vdwg.mxu0
    %v1228 = vsel %vm177, %v158, 0
    %v1231 = vsel %vm177, %v175, 0
    %1233 = vmatprep.subr.mxu0 0.0
    %1234 = vmatpush1.xpose.msra.mxu0 0.0
    %1235 = vmatprep.subr.mxu0 0.0
    %1236 = vmatpush1.xpose.msra.mxu0 0.0
    %1237 = vmatprep.subr.mxu0 0.0
    %1238 = vmatpush1.xpose.msra.mxu0 0.0
    %1239 = vmatprep.subr.mxu0 0.0
    %1240 = vmatpush1.xpose.msra.mxu0 0.0
    %1241 = vmatprep.subr.mxu0 0.0
    %1242 = vmatpush1.xpose.msra.mxu0 0.0
    %1243 = vmatprep.subr.mxu0 0.0
    %1244 = vmatpush1.xpose.msra.mxu0 0.0
    %1245 = vmatprep.subr.mxu0 0.0
    %1246 = vmatpush1.xpose.msra.mxu0 0.0
    %1247 = vmatprep.subr.mxu0 0.0
    %1248 = vmatpush1.xpose.msra.mxu0 0.0
    %1249 = vmatprep.subr.mxu0 0.0
    %1250 = vmatpush1.xpose.msra.mxu0 0.0
    %1251 = vmatprep.subr.mxu0 0.0
    %1252 = vmatpush1.xpose.msra.mxu0 0.0
    %1253 = vmatprep.subr.mxu0 0.0
    %1254 = vmatpush1.xpose.msra.mxu0 0.0
    %1255 = vmatprep.subr.mxu0 0.0
    %1256 = vmatpush1.xpose.msra.mxu0 0.0
    %1257 = vmatprep.subr.mxu0 0.0
    %1258 = vmatpush1.xpose.msra.mxu0 0.0
    %1259 = vmatprep.subr.mxu0 0.0
    %1260 = vmatpush1.xpose.msra.mxu0 0.0
    %1261 = vmatprep.subr.mxu0 0.0
    %1262 = vmatpush1.xpose.msra.mxu0 0.0
    %1263 = vmatprep.subr.mxu0 0.0
    %1264 = vmatpush1.xpose.msra.mxu0 %v1231
    %1265 = vmatprep.subr.mxu0 0.0
    %1266 = vmatpush2.xpose.msra.mxu0 0.0
    %1267 = vmatprep.subr.mxu0 0.0
    %1268 = vmatpush2.xpose.msra.mxu0 0.0
    %1269 = vmatprep.subr.mxu0 0.0
    %1270 = vmatpush2.xpose.msra.mxu0 0.0
    %1271 = vmatprep.subr.mxu0 0.0
    %1272 = vmatpush2.xpose.msra.mxu0 0.0
    %1273 = vmatprep.subr.mxu0 0.0
    %1274 = vmatpush2.xpose.msra.mxu0 0.0
    %1275 = vmatprep.subr.mxu0 0.0
    %1276 = vmatpush2.xpose.msra.mxu0 0.0
    %1277 = vmatprep.subr.mxu0 0.0
    %1278 = vmatpush2.xpose.msra.mxu0 0.0
    %1279 = vmatprep.subr.mxu0 0.0
    %1280 = vmatpush2.xpose.msra.mxu0 0.0
    %1281 = vmatprep.subr.mxu0 0.0
    %1282 = vmatpush2.xpose.msra.mxu0 0.0
    %1283 = vmatprep.subr.mxu0 0.0
    %1284 = vmatpush2.xpose.msra.mxu0 0.0
    %1285 = vmatprep.subr.mxu0 0.0
    %1286 = vmatpush2.xpose.msra.mxu0 0.0
    %1287 = vmatprep.subr.mxu0 0.0
    %1288 = vmatpush2.xpose.msra.mxu0 0.0
    %1289 = vmatprep.subr.mxu0 0.0
    %1290 = vmatpush2.xpose.msra.mxu0 0.0
    %1291 = vmatprep.subr.mxu0 0.0
    %1292 = vmatpush2.xpose.msra.mxu0 0.0
    %1293 = vmatprep.subr.mxu0 0.0
    %1294 = vmatpush2.xpose.msra.mxu0 0.0
    %1295 = vmatprep.subr.mxu0 0.0
    %1296 = vmatpush2.xpose.msra.mxu0 0.0
    %1297 = vmatprep.mubr.f32.mxu0 0.0
    %1298 = vmatmul.mubr.f32.gmra.mxu0 %v1228
    %v1299 = vpop.f32.mrf.mxu0
    %v1300 = vadd.f32 0.0, %v1299
    %v1301 = vpop.f32.mrf.mxu0
    %1302 = vdwg.mxu0
    %v1303 = vsel %vm177, %v160, 0
    %v1306 = vsel %vm177, %v176, 0
    %1308 = vmatprep.subr.mxu0 0.0
    %1309 = vmatpush1.xpose.msra.mxu0 0.0
    %1310 = vmatprep.subr.mxu0 0.0
    %1311 = vmatpush1.xpose.msra.mxu0 0.0
    %1312 = vmatprep.subr.mxu0 0.0
    %1313 = vmatpush1.xpose.msra.mxu0 0.0
    %1314 = vmatprep.subr.mxu0 0.0
    %1315 = vmatpush1.xpose.msra.mxu0 0.0
    %1316 = vmatprep.subr.mxu0 0.0
    %1317 = vmatpush1.xpose.msra.mxu0 0.0
    %1318 = vmatprep.subr.mxu0 0.0
    %1319 = vmatpush1.xpose.msra.mxu0 0.0
    %1320 = vmatprep.subr.mxu0 0.0
    %1321 = vmatpush1.xpose.msra.mxu0 0.0
    %1322 = vmatprep.subr.mxu0 0.0
    %1323 = vmatpush1.xpose.msra.mxu0 0.0
    %1324 = vmatprep.subr.mxu0 0.0
    %1325 = vmatpush1.xpose.msra.mxu0 0.0
    %1326 = vmatprep.subr.mxu0 0.0
    %1327 = vmatpush1.xpose.msra.mxu0 0.0
    %1328 = vmatprep.subr.mxu0 0.0
    %1329 = vmatpush1.xpose.msra.mxu0 0.0
    %1330 = vmatprep.subr.mxu0 0.0
    %1331 = vmatpush1.xpose.msra.mxu0 0.0
    %1332 = vmatprep.subr.mxu0 0.0
    %1333 = vmatpush1.xpose.msra.mxu0 0.0
    %1334 = vmatprep.subr.mxu0 0.0
    %1335 = vmatpush1.xpose.msra.mxu0 0.0
    %1336 = vmatprep.subr.mxu0 0.0
    %1337 = vmatpush1.xpose.msra.mxu0 0.0
    %1338 = vmatprep.subr.mxu0 0.0
    %1339 = vmatpush1.xpose.msra.mxu0 %v1306
    %1340 = vmatprep.subr.mxu0 0.0
    %1341 = vmatpush2.xpose.msra.mxu0 0.0
    %1342 = vmatprep.subr.mxu0 0.0
    %1343 = vmatpush2.xpose.msra.mxu0 0.0
    %1344 = vmatprep.subr.mxu0 0.0
    %1345 = vmatpush2.xpose.msra.mxu0 0.0
    %1346 = vmatprep.subr.mxu0 0.0
    %1347 = vmatpush2.xpose.msra.mxu0 0.0
    %1348 = vmatprep.subr.mxu0 0.0
    %1349 = vmatpush2.xpose.msra.mxu0 0.0
    %1350 = vmatprep.subr.mxu0 0.0
    %1351 = vmatpush2.xpose.msra.mxu0 0.0
    %1352 = vmatprep.subr.mxu0 0.0
    %1353 = vmatpush2.xpose.msra.mxu0 0.0
    %1354 = vmatprep.subr.mxu0 0.0
    %1355 = vmatpush2.xpose.msra.mxu0 0.0
    %1356 = vmatprep.subr.mxu0 0.0
    %1357 = vmatpush2.xpose.msra.mxu0 0.0
    %1358 = vmatprep.subr.mxu0 0.0
    %1359 = vmatpush2.xpose.msra.mxu0 0.0
    %1360 = vmatprep.subr.mxu0 0.0
    %1361 = vmatpush2.xpose.msra.mxu0 0.0
    %1362 = vmatprep.subr.mxu0 0.0
    %1363 = vmatpush2.xpose.msra.mxu0 0.0
    %1364 = vmatprep.subr.mxu0 0.0
    %1365 = vmatpush2.xpose.msra.mxu0 0.0
    %1366 = vmatprep.subr.mxu0 0.0
    %1367 = vmatpush2.xpose.msra.mxu0 0.0
    %1368 = vmatprep.subr.mxu0 0.0
    %1369 = vmatpush2.xpose.msra.mxu0 0.0
    %1370 = vmatprep.subr.mxu0 0.0
    %1371 = vmatpush2.xpose.msra.mxu0 0.0
    %1372 = vmatprep.mubr.f32.mxu0 0.0
    %1373 = vmatmul.mubr.f32.gmra.mxu0 %v1303
    %v1374 = vpop.f32.mrf.mxu0
    %v1375 = vadd.f32 0.0, %v1374
    %v1376 = vpop.f32.mrf.mxu0
    %1377 = vdwg.mxu0
    %vm1378 = vcmask 57344
    %v1379 = vsel %vm1378, %v250, -inf
    %1380 = vmax.xlane.f32.xlu0 %v1379
    %v1381 = vpop.xlane.xlu0 %1380
    %v1382 = vsel %vm1378, %v325, -inf
    %1383 = vmax.xlane.f32.xlu0 %v1382
    %v1384 = vpop.xlane.xlu0 %1383
    %v1385 = vsel %vm1378, %v400, -inf
    %1386 = vmax.xlane.f32.xlu0 %v1385
    %v1387 = vpop.xlane.xlu0 %1386
    %v1388 = vsel %vm1378, %v475, -inf
    %1389 = vmax.xlane.f32.xlu0 %v1388
    %v1390 = vpop.xlane.xlu0 %1389
    %v1391 = vsel %vm1378, %v550, -inf
    %1392 = vmax.xlane.f32.xlu0 %v1391
    %v1393 = vpop.xlane.xlu0 %1392
    %v1394 = vsel %vm1378, %v625, -inf
    %1395 = vmax.xlane.f32.xlu0 %v1394
    %v1396 = vpop.xlane.xlu0 %1395
    %v1397 = vsel %vm1378, %v700, -inf
    %1398 = vmax.xlane.f32.xlu0 %v1397
    %v1399 = vpop.xlane.xlu0 %1398
    %v1400 = vsel %vm1378, %v775, -inf
    %1401 = vmax.xlane.f32.xlu0 %v1400
    %v1402 = vpop.xlane.xlu0 %1401
    %v1403 = vsel %vm1378, %v850, -inf
    %1404 = vmax.xlane.f32.xlu0 %v1403
    %v1405 = vpop.xlane.xlu0 %1404
    %v1406 = vsel %vm1378, %v925, -inf
    %1407 = vmax.xlane.f32.xlu0 %v1406
    %v1408 = vpop.xlane.xlu0 %1407
    %v1409 = vsel %vm1378, %v1000, -inf
    %1410 = vmax.xlane.f32.xlu0 %v1409
    %v1411 = vpop.xlane.xlu0 %1410
    %v1412 = vsel %vm1378, %v1075, -inf
    %1413 = vmax.xlane.f32.xlu0 %v1412
    %v1414 = vpop.xlane.xlu0 %1413
    %v1415 = vsel %vm1378, %v1150, -inf
    %1416 = vmax.xlane.f32.xlu0 %v1415
    %v1417 = vpop.xlane.xlu0 %1416
    %v1418 = vsel %vm1378, %v1225, -inf
    %1419 = vmax.xlane.f32.xlu0 %v1418
    %v1420 = vpop.xlane.xlu0 %1419
    %v1421 = vsel %vm1378, %v1300, -inf
    %1422 = vmax.xlane.f32.xlu0 %v1421
    %v1423 = vpop.xlane.xlu0 %1422
    %v1424 = vsel %vm1378, %v1375, -inf
    %1425 = vmax.xlane.f32.xlu0 %v1424
    %v1426 = vpop.xlane.xlu0 %1425
    %v1427 = vsub.f32 %v250, %v1381
    %v1428 = vsub.f32 %v325, %v1384
    %v1429 = vsub.f32 %v400, %v1387
    %v1430 = vsub.f32 %v475, %v1390
    %v1431 = vsub.f32 %v550, %v1393
    %v1432 = vsub.f32 %v625, %v1396
    %v1433 = vsub.f32 %v700, %v1399
    %v1434 = vsub.f32 %v775, %v1402
    %v1435 = vsub.f32 %v850, %v1405
    %v1436 = vsub.f32 %v925, %v1408
    %v1437 = vsub.f32 %v1000, %v1411
    %v1438 = vsub.f32 %v1075, %v1414
    %v1439 = vsub.f32 %v1150, %v1417
    %v1440 = vsub.f32 %v1225, %v1420
    %v1441 = vsub.f32 %v1300, %v1423
    %v1442 = vsub.f32 %v1375, %v1426
    %v1443 = vmul.f32 %v1427, 1.442695
    %v1444 = vpow.pop %v1443
    %v1445 = vmul.f32 %v1428, 1.442695
    %v1446 = vpow.pop %v1445
    %v1447 = vmul.f32 %v1429, 1.442695
    %v1448 = vpow.pop %v1447
    %v1449 = vmul.f32 %v1430, 1.442695
    %v1450 = vpow.pop %v1449
    %v1451 = vmul.f32 %v1431, 1.442695
    %v1452 = vpow.pop %v1451
    %v1453 = vmul.f32 %v1432, 1.442695
    %v1454 = vpow.pop %v1453
    %v1455 = vmul.f32 %v1433, 1.442695
    %v1456 = vpow.pop %v1455
    %v1457 = vmul.f32 %v1434, 1.442695
    %v1458 = vpow.pop %v1457
    %v1459 = vmul.f32 %v1435, 1.442695
    %v1460 = vpow.pop %v1459
    %v1461 = vmul.f32 %v1436, 1.442695
    %v1462 = vpow.pop %v1461
    %v1463 = vmul.f32 %v1437, 1.442695
    %v1464 = vpow.pop %v1463
    %v1465 = vmul.f32 %v1438, 1.442695
    %v1466 = vpow.pop %v1465
    %v1467 = vmul.f32 %v1439, 1.442695
    %v1468 = vpow.pop %v1467
    %v1469 = vmul.f32 %v1440, 1.442695
    %v1470 = vpow.pop %v1469
    %v1471 = vmul.f32 %v1441, 1.442695
    %v1472 = vpow.pop %v1471
    %v1473 = vmul.f32 %v1442, 1.442695
    %v1474 = vpow.pop %v1473
    %v1475 = vsel %vm1378, %v1444, 0.0
    %1476 = vadd.xlane.f32.xlu0 %v1475
    %v1477 = vpop.xlane.xlu0 %1476
    %v1478 = vsel %vm1378, %v1446, 0.0
    %1479 = vadd.xlane.f32.xlu0 %v1478
    %v1480 = vpop.xlane.xlu0 %1479
    %v1481 = vsel %vm1378, %v1448, 0.0
    %1482 = vadd.xlane.f32.xlu0 %v1481
    %v1483 = vpop.xlane.xlu0 %1482
    %v1484 = vsel %vm1378, %v1450, 0.0
    %1485 = vadd.xlane.f32.xlu0 %v1484
    %v1486 = vpop.xlane.xlu0 %1485
    %v1487 = vsel %vm1378, %v1452, 0.0
    %1488 = vadd.xlane.f32.xlu0 %v1487
    %v1489 = vpop.xlane.xlu0 %1488
    %v1490 = vsel %vm1378, %v1454, 0.0
    %1491 = vadd.xlane.f32.xlu0 %v1490
    %v1492 = vpop.xlane.xlu0 %1491
    %v1493 = vsel %vm1378, %v1456, 0.0
    %1494 = vadd.xlane.f32.xlu0 %v1493
    %v1495 = vpop.xlane.xlu0 %1494
    %v1496 = vsel %vm1378, %v1458, 0.0
    %1497 = vadd.xlane.f32.xlu0 %v1496
    %v1498 = vpop.xlane.xlu0 %1497
    %v1499 = vsel %vm1378, %v1460, 0.0
    %1500 = vadd.xlane.f32.xlu0 %v1499
    %v1501 = vpop.xlane.xlu0 %1500
    %v1502 = vsel %vm1378, %v1462, 0.0
    %1503 = vadd.xlane.f32.xlu0 %v1502
    %v1504 = vpop.xlane.xlu0 %1503
    %v1505 = vsel %vm1378, %v1464, 0.0
    %1506 = vadd.xlane.f32.xlu0 %v1505
    %v1507 = vpop.xlane.xlu0 %1506
    %v1508 = vsel %vm1378, %v1466, 0.0
    %1509 = vadd.xlane.f32.xlu0 %v1508
    %v1510 = vpop.xlane.xlu0 %1509
    %v1511 = vsel %vm1378, %v1468, 0.0
    %1512 = vadd.xlane.f32.xlu0 %v1511
    %v1513 = vpop.xlane.xlu0 %1512
    %v1514 = vsel %vm1378, %v1470, 0.0
    %1515 = vadd.xlane.f32.xlu0 %v1514
    %v1516 = vpop.xlane.xlu0 %1515
    %v1517 = vsel %vm1378, %v1472, 0.0
    %1518 = vadd.xlane.f32.xlu0 %v1517
    %v1519 = vpop.xlane.xlu0 %1518
    %v1520 = vsel %vm1378, %v1474, 0.0
    %1521 = vadd.xlane.f32.xlu0 %v1520
    %v1522 = vpop.xlane.xlu0 %1521
    %v1523 = vrcp.pop %v1477
    %v1524 = vrcp.pop %v1480
    %v1525 = vrcp.pop %v1483
    %v1526 = vrcp.pop %v1486
    %v1527 = vrcp.pop %v1489
    %v1528 = vrcp.pop %v1492
    %v1529 = vrcp.pop %v1495
    %v1530 = vrcp.pop %v1498
    %v1531 = vrcp.pop %v1501
    %v1532 = vrcp.pop %v1504
    %v1533 = vrcp.pop %v1507
    %v1534 = vrcp.pop %v1510
    %v1535 = vrcp.pop %v1513
    %v1536 = vrcp.pop %v1516
    %v1537 = vrcp.pop %v1519
    %v1538 = vrcp.pop %v1522
    %v1539 = vmul.f32 %v1444, %v1523
    %v1540 = vmul.f32 %v1446, %v1524
    %v1541 = vmul.f32 %v1448, %v1525
    %v1542 = vmul.f32 %v1450, %v1526
    %v1543 = vmul.f32 %v1452, %v1527
    %v1544 = vmul.f32 %v1454, %v1528
    %v1545 = vmul.f32 %v1456, %v1529
    %v1546 = vmul.f32 %v1458, %v1530
    %v1547 = vmul.f32 %v1460, %v1531
    %v1548 = vmul.f32 %v1462, %v1532
    %v1549 = vmul.f32 %v1464, %v1533
    %v1550 = vmul.f32 %v1466, %v1534
    %v1551 = vmul.f32 %v1468, %v1535
    %v1552 = vmul.f32 %v1470, %v1536
    %v1553 = vmul.f32 %v1472, %v1537
    %v1554 = vmul.f32 %v1474, %v1538
    %vm1555 = vcmask 64512
    %v1557 = vsel %vm1555, %v1539, 0
    %1559 = vmatprep.subr.mxu0 0.0
    %1560 = vmatpush1.msra.mxu0 0.0
    %1561 = vmatprep.subr.mxu0 0.0
    %1562 = vmatpush1.msra.mxu0 0.0
    %1563 = vmatprep.subr.mxu0 0.0
    %1564 = vmatpush1.msra.mxu0 0.0
    %1565 = vmatprep.subr.mxu0 0.0
    %1566 = vmatpush1.msra.mxu0 0.0
    %1567 = vmatprep.subr.mxu0 0.0
    %1568 = vmatpush1.msra.mxu0 0.0
    %1569 = vmatprep.subr.mxu0 0.0
    %1570 = vmatpush1.msra.mxu0 0.0
    %1571 = vmatprep.subr.mxu0 0.0
    %1572 = vmatpush1.msra.mxu0 0.0
    %1573 = vmatprep.subr.mxu0 0.0
    %1574 = vmatpush1.msra.mxu0 0.0
    %1575 = vmatprep.subr.mxu0 0.0
    %1576 = vmatpush1.msra.mxu0 0.0
    %1577 = vmatprep.subr.mxu0 0.0
    %1578 = vmatpush1.msra.mxu0 0.0
    %1579 = vmatprep.subr.mxu0 0.0
    %1580 = vmatpush1.msra.mxu0 0.0
    %1581 = vmatprep.subr.mxu0 0.0
    %1582 = vmatpush1.msra.mxu0 0.0
    %1583 = vmatprep.subr.mxu0 0.0
    %1584 = vmatpush1.msra.mxu0 0.0
    %1585 = vmatprep.subr.mxu0 0.0
    %1586 = vmatpush1.msra.mxu0 0.0
    %1587 = vmatprep.subr.mxu0 0.0
    %1588 = vmatpush1.msra.mxu0 0.0
    %1589 = vmatprep.subr.mxu0 0.0
    %1590 = vmatpush1.msra.mxu0 %v161
    %1591 = vmatprep.subr.mxu0 0.0
    %1592 = vmatpush2.msra.mxu0 0.0
    %1593 = vmatprep.subr.mxu0 0.0
    %1594 = vmatpush2.msra.mxu0 0.0
    %1595 = vmatprep.subr.mxu0 0.0
    %1596 = vmatpush2.msra.mxu0 0.0
    %1597 = vmatprep.subr.mxu0 0.0
    %1598 = vmatpush2.msra.mxu0 0.0
    %1599 = vmatprep.subr.mxu0 0.0
    %1600 = vmatpush2.msra.mxu0 0.0
    %1601 = vmatprep.subr.mxu0 0.0
    %1602 = vmatpush2.msra.mxu0 0.0
    %1603 = vmatprep.subr.mxu0 0.0
    %1604 = vmatpush2.msra.mxu0 0.0
    %1605 = vmatprep.subr.mxu0 0.0
    %1606 = vmatpush2.msra.mxu0 0.0
    %1607 = vmatprep.subr.mxu0 0.0
    %1608 = vmatpush2.msra.mxu0 0.0
    %1609 = vmatprep.subr.mxu0 0.0
    %1610 = vmatpush2.msra.mxu0 0.0
    %1611 = vmatprep.subr.mxu0 0.0
    %1612 = vmatpush2.msra.mxu0 0.0
    %1613 = vmatprep.subr.mxu0 0.0
    %1614 = vmatpush2.msra.mxu0 0.0
    %1615 = vmatprep.subr.mxu0 0.0
    %1616 = vmatpush2.msra.mxu0 0.0
    %1617 = vmatprep.subr.mxu0 0.0
    %1618 = vmatpush2.msra.mxu0 0.0
    %1619 = vmatprep.subr.mxu0 0.0
    %1620 = vmatpush2.msra.mxu0 0.0
    %1621 = vmatprep.subr.mxu0 0.0
    %1622 = vmatpush2.msra.mxu0 0.0
    %1623 = vmatprep.mubr.f32.mxu0 0.0
    %1624 = vmatmul.mubr.f32.gmra.mxu0 %v1557
    %v1625 = vpop.f32.mrf.mxu0
    %v1626 = vadd.f32 0.0, %v1625
    %v1627 = vpop.f32.mrf.mxu0
    %1628 = vdwg.mxu0
    %v1630 = vsel %vm1555, %v1540, 0
    %1632 = vmatprep.subr.mxu0 0.0
    %1633 = vmatpush1.msra.mxu0 0.0
    %1634 = vmatprep.subr.mxu0 0.0
    %1635 = vmatpush1.msra.mxu0 0.0
    %1636 = vmatprep.subr.mxu0 0.0
    %1637 = vmatpush1.msra.mxu0 0.0
    %1638 = vmatprep.subr.mxu0 0.0
    %1639 = vmatpush1.msra.mxu0 0.0
    %1640 = vmatprep.subr.mxu0 0.0
    %1641 = vmatpush1.msra.mxu0 0.0
    %1642 = vmatprep.subr.mxu0 0.0
    %1643 = vmatpush1.msra.mxu0 0.0
    %1644 = vmatprep.subr.mxu0 0.0
    %1645 = vmatpush1.msra.mxu0 0.0
    %1646 = vmatprep.subr.mxu0 0.0
    %1647 = vmatpush1.msra.mxu0 0.0
    %1648 = vmatprep.subr.mxu0 0.0
    %1649 = vmatpush1.msra.mxu0 0.0
    %1650 = vmatprep.subr.mxu0 0.0
    %1651 = vmatpush1.msra.mxu0 0.0
    %1652 = vmatprep.subr.mxu0 0.0
    %1653 = vmatpush1.msra.mxu0 0.0
    %1654 = vmatprep.subr.mxu0 0.0
    %1655 = vmatpush1.msra.mxu0 0.0
    %1656 = vmatprep.subr.mxu0 0.0
    %1657 = vmatpush1.msra.mxu0 0.0
    %1658 = vmatprep.subr.mxu0 0.0
    %1659 = vmatpush1.msra.mxu0 0.0
    %1660 = vmatprep.subr.mxu0 0.0
    %1661 = vmatpush1.msra.mxu0 0.0
    %1662 = vmatprep.subr.mxu0 0.0
    %1663 = vmatpush1.msra.mxu0 %v162
    %1664 = vmatprep.subr.mxu0 0.0
    %1665 = vmatpush2.msra.mxu0 0.0
    %1666 = vmatprep.subr.mxu0 0.0
    %1667 = vmatpush2.msra.mxu0 0.0
    %1668 = vmatprep.subr.mxu0 0.0
    %1669 = vmatpush2.msra.mxu0 0.0
    %1670 = vmatprep.subr.mxu0 0.0
    %1671 = vmatpush2.msra.mxu0 0.0
    %1672 = vmatprep.subr.mxu0 0.0
    %1673 = vmatpush2.msra.mxu0 0.0
    %1674 = vmatprep.subr.mxu0 0.0
    %1675 = vmatpush2.msra.mxu0 0.0
    %1676 = vmatprep.subr.mxu0 0.0
    %1677 = vmatpush2.msra.mxu0 0.0
    %1678 = vmatprep.subr.mxu0 0.0
    %1679 = vmatpush2.msra.mxu0 0.0
    %1680 = vmatprep.subr.mxu0 0.0
    %1681 = vmatpush2.msra.mxu0 0.0
    %1682 = vmatprep.subr.mxu0 0.0
    %1683 = vmatpush2.msra.mxu0 0.0
    %1684 = vmatprep.subr.mxu0 0.0
    %1685 = vmatpush2.msra.mxu0 0.0
    %1686 = vmatprep.subr.mxu0 0.0
    %1687 = vmatpush2.msra.mxu0 0.0
    %1688 = vmatprep.subr.mxu0 0.0
    %1689 = vmatpush2.msra.mxu0 0.0
    %1690 = vmatprep.subr.mxu0 0.0
    %1691 = vmatpush2.msra.mxu0 0.0
    %1692 = vmatprep.subr.mxu0 0.0
    %1693 = vmatpush2.msra.mxu0 0.0
    %1694 = vmatprep.subr.mxu0 0.0
    %1695 = vmatpush2.msra.mxu0 0.0
    %1696 = vmatprep.mubr.f32.mxu0 0.0
    %1697 = vmatmul.mubr.f32.gmra.mxu0 %v1630
    %v1698 = vpop.f32.mrf.mxu0
    %v1699 = vadd.f32 0.0, %v1698
    %v1700 = vpop.f32.mrf.mxu0
    %1701 = vdwg.mxu0
    %v1703 = vsel %vm1555, %v1541, 0
    %1705 = vmatprep.subr.mxu0 0.0
    %1706 = vmatpush1.msra.mxu0 0.0
    %1707 = vmatprep.subr.mxu0 0.0
    %1708 = vmatpush1.msra.mxu0 0.0
    %1709 = vmatprep.subr.mxu0 0.0
    %1710 = vmatpush1.msra.mxu0 0.0
    %1711 = vmatprep.subr.mxu0 0.0
    %1712 = vmatpush1.msra.mxu0 0.0
    %1713 = vmatprep.subr.mxu0 0.0
    %1714 = vmatpush1.msra.mxu0 0.0
    %1715 = vmatprep.subr.mxu0 0.0
    %1716 = vmatpush1.msra.mxu0 0.0
    %1717 = vmatprep.subr.mxu0 0.0
    %1718 = vmatpush1.msra.mxu0 0.0
    %1719 = vmatprep.subr.mxu0 0.0
    %1720 = vmatpush1.msra.mxu0 0.0
    %1721 = vmatprep.subr.mxu0 0.0
    %1722 = vmatpush1.msra.mxu0 0.0
    %1723 = vmatprep.subr.mxu0 0.0
    %1724 = vmatpush1.msra.mxu0 0.0
    %1725 = vmatprep.subr.mxu0 0.0
    %1726 = vmatpush1.msra.mxu0 0.0
    %1727 = vmatprep.subr.mxu0 0.0
    %1728 = vmatpush1.msra.mxu0 0.0
    %1729 = vmatprep.subr.mxu0 0.0
    %1730 = vmatpush1.msra.mxu0 0.0
    %1731 = vmatprep.subr.mxu0 0.0
    %1732 = vmatpush1.msra.mxu0 0.0
    %1733 = vmatprep.subr.mxu0 0.0
    %1734 = vmatpush1.msra.mxu0 0.0
    %1735 = vmatprep.subr.mxu0 0.0
    %1736 = vmatpush1.msra.mxu0 %v163
    %1737 = vmatprep.subr.mxu0 0.0
    %1738 = vmatpush2.msra.mxu0 0.0
    %1739 = vmatprep.subr.mxu0 0.0
    %1740 = vmatpush2.msra.mxu0 0.0
    %1741 = vmatprep.subr.mxu0 0.0
    %1742 = vmatpush2.msra.mxu0 0.0
    %1743 = vmatprep.subr.mxu0 0.0
    %1744 = vmatpush2.msra.mxu0 0.0
    %1745 = vmatprep.subr.mxu0 0.0
    %1746 = vmatpush2.msra.mxu0 0.0
    %1747 = vmatprep.subr.mxu0 0.0
    %1748 = vmatpush2.msra.mxu0 0.0
    %1749 = vmatprep.subr.mxu0 0.0
    %1750 = vmatpush2.msra.mxu0 0.0
    %1751 = vmatprep.subr.mxu0 0.0
    %1752 = vmatpush2.msra.mxu0 0.0
    %1753 = vmatprep.subr.mxu0 0.0
    %1754 = vmatpush2.msra.mxu0 0.0
    %1755 = vmatprep.subr.mxu0 0.0
    %1756 = vmatpush2.msra.mxu0 0.0
    %1757 = vmatprep.subr.mxu0 0.0
    %1758 = vmatpush2.msra.mxu0 0.0
    %1759 = vmatprep.subr.mxu0 0.0
    %1760 = vmatpush2.msra.mxu0 0.0
    %1761 = vmatprep.subr.mxu0 0.0
    %1762 = vmatpush2.msra.mxu0 0.0
    %1763 = vmatprep.subr.mxu0 0.0
    %1764 = vmatpush2.msra.mxu0 0.0
    %1765 = vmatprep.subr.mxu0 0.0
    %1766 = vmatpush2.msra.mxu0 0.0
    %1767 = vmatprep.subr.mxu0 0.0
    %1768 = vmatpush2.msra.mxu0 0.0
    %1769 = vmatprep.mubr.f32.mxu0 0.0
    %1770 = vmatmul.mubr.f32.gmra.mxu0 %v1703
    %v1771 = vpop.f32.mrf.mxu0
    %v1772 = vadd.f32 0.0, %v1771
    %v1773 = vpop.f32.mrf.mxu0
    %1774 = vdwg.mxu0
    %v1776 = vsel %vm1555, %v1542, 0
    %1778 = vmatprep.subr.mxu0 0.0
    %1779 = vmatpush1.msra.mxu0 0.0
    %1780 = vmatprep.subr.mxu0 0.0
    %1781 = vmatpush1.msra.mxu0 0.0
    %1782 = vmatprep.subr.mxu0 0.0
    %1783 = vmatpush1.msra.mxu0 0.0
    %1784 = vmatprep.subr.mxu0 0.0
    %1785 = vmatpush1.msra.mxu0 0.0
    %1786 = vmatprep.subr.mxu0 0.0
    %1787 = vmatpush1.msra.mxu0 0.0
    %1788 = vmatprep.subr.mxu0 0.0
    %1789 = vmatpush1.msra.mxu0 0.0
    %1790 = vmatprep.subr.mxu0 0.0
    %1791 = vmatpush1.msra.mxu0 0.0
    %1792 = vmatprep.subr.mxu0 0.0
    %1793 = vmatpush1.msra.mxu0 0.0
    %1794 = vmatprep.subr.mxu0 0.0
    %1795 = vmatpush1.msra.mxu0 0.0
    %1796 = vmatprep.subr.mxu0 0.0
    %1797 = vmatpush1.msra.mxu0 0.0
    %1798 = vmatprep.subr.mxu0 0.0
    %1799 = vmatpush1.msra.mxu0 0.0
    %1800 = vmatprep.subr.mxu0 0.0
    %1801 = vmatpush1.msra.mxu0 0.0
    %1802 = vmatprep.subr.mxu0 0.0
    %1803 = vmatpush1.msra.mxu0 0.0
    %1804 = vmatprep.subr.mxu0 0.0
    %1805 = vmatpush1.msra.mxu0 0.0
    %1806 = vmatprep.subr.mxu0 0.0
    %1807 = vmatpush1.msra.mxu0 0.0
    %1808 = vmatprep.subr.mxu0 0.0
    %1809 = vmatpush1.msra.mxu0 %v164
    %1810 = vmatprep.subr.mxu0 0.0
    %1811 = vmatpush2.msra.mxu0 0.0
    %1812 = vmatprep.subr.mxu0 0.0
    %1813 = vmatpush2.msra.mxu0 0.0
    %1814 = vmatprep.subr.mxu0 0.0
    %1815 = vmatpush2.msra.mxu0 0.0
    %1816 = vmatprep.subr.mxu0 0.0
    %1817 = vmatpush2.msra.mxu0 0.0
    %1818 = vmatprep.subr.mxu0 0.0
    %1819 = vmatpush2.msra.mxu0 0.0
    %1820 = vmatprep.subr.mxu0 0.0
    %1821 = vmatpush2.msra.mxu0 0.0
    %1822 = vmatprep.subr.mxu0 0.0
    %1823 = vmatpush2.msra.mxu0 0.0
    %1824 = vmatprep.subr.mxu0 0.0
    %1825 = vmatpush2.msra.mxu0 0.0
    %1826 = vmatprep.subr.mxu0 0.0
    %1827 = vmatpush2.msra.mxu0 0.0
    %1828 = vmatprep.subr.mxu0 0.0
    %1829 = vmatpush2.msra.mxu0 0.0
    %1830 = vmatprep.subr.mxu0 0.0
    %1831 = vmatpush2.msra.mxu0 0.0
    %1832 = vmatprep.subr.mxu0 0.0
    %1833 = vmatpush2.msra.mxu0 0.0
    %1834 = vmatprep.subr.mxu0 0.0
    %1835 = vmatpush2.msra.mxu0 0.0
    %1836 = vmatprep.subr.mxu0 0.0
    %1837 = vmatpush2.msra.mxu0 0.0
    %1838 = vmatprep.subr.mxu0 0.0
    %1839 = vmatpush2.msra.mxu0 0.0
    %1840 = vmatprep.subr.mxu0 0.0
    %1841 = vmatpush2.msra.mxu0 0.0
    %1842 = vmatprep.mubr.f32.mxu0 0.0
    %1843 = vmatmul.mubr.f32.gmra.mxu0 %v1776
    %v1844 = vpop.f32.mrf.mxu0
    %v1845 = vadd.f32 0.0, %v1844
    %v1846 = vpop.f32.mrf.mxu0
    %1847 = vdwg.mxu0
    %v1849 = vsel %vm1555, %v1543, 0
    %1851 = vmatprep.subr.mxu0 0.0
    %1852 = vmatpush1.msra.mxu0 0.0
    %1853 = vmatprep.subr.mxu0 0.0
    %1854 = vmatpush1.msra.mxu0 0.0
    %1855 = vmatprep.subr.mxu0 0.0
    %1856 = vmatpush1.msra.mxu0 0.0
    %1857 = vmatprep.subr.mxu0 0.0
    %1858 = vmatpush1.msra.mxu0 0.0
    %1859 = vmatprep.subr.mxu0 0.0
    %1860 = vmatpush1.msra.mxu0 0.0
    %1861 = vmatprep.subr.mxu0 0.0
    %1862 = vmatpush1.msra.mxu0 0.0
    %1863 = vmatprep.subr.mxu0 0.0
    %1864 = vmatpush1.msra.mxu0 0.0
    %1865 = vmatprep.subr.mxu0 0.0
    %1866 = vmatpush1.msra.mxu0 0.0
    %1867 = vmatprep.subr.mxu0 0.0
    %1868 = vmatpush1.msra.mxu0 0.0
    %1869 = vmatprep.subr.mxu0 0.0
    %1870 = vmatpush1.msra.mxu0 0.0
    %1871 = vmatprep.subr.mxu0 0.0
    %1872 = vmatpush1.msra.mxu0 0.0
    %1873 = vmatprep.subr.mxu0 0.0
    %1874 = vmatpush1.msra.mxu0 0.0
    %1875 = vmatprep.subr.mxu0 0.0
    %1876 = vmatpush1.msra.mxu0 0.0
    %1877 = vmatprep.subr.mxu0 0.0
    %1878 = vmatpush1.msra.mxu0 0.0
    %1879 = vmatprep.subr.mxu0 0.0
    %1880 = vmatpush1.msra.mxu0 0.0
    %1881 = vmatprep.subr.mxu0 0.0
    %1882 = vmatpush1.msra.mxu0 %v165
    %1883 = vmatprep.subr.mxu0 0.0
    %1884 = vmatpush2.msra.mxu0 0.0
    %1885 = vmatprep.subr.mxu0 0.0
    %1886 = vmatpush2.msra.mxu0 0.0
    %1887 = vmatprep.subr.mxu0 0.0
    %1888 = vmatpush2.msra.mxu0 0.0
    %1889 = vmatprep.subr.mxu0 0.0
    %1890 = vmatpush2.msra.mxu0 0.0
    %1891 = vmatprep.subr.mxu0 0.0
    %1892 = vmatpush2.msra.mxu0 0.0
    %1893 = vmatprep.subr.mxu0 0.0
    %1894 = vmatpush2.msra.mxu0 0.0
    %1895 = vmatprep.subr.mxu0 0.0
    %1896 = vmatpush2.msra.mxu0 0.0
    %1897 = vmatprep.subr.mxu0 0.0
    %1898 = vmatpush2.msra.mxu0 0.0
    %1899 = vmatprep.subr.mxu0 0.0
    %1900 = vmatpush2.msra.mxu0 0.0
    %1901 = vmatprep.subr.mxu0 0.0
    %1902 = vmatpush2.msra.mxu0 0.0
    %1903 = vmatprep.subr.mxu0 0.0
    %1904 = vmatpush2.msra.mxu0 0.0
    %1905 = vmatprep.subr.mxu0 0.0
    %1906 = vmatpush2.msra.mxu0 0.0
    %1907 = vmatprep.subr.mxu0 0.0
    %1908 = vmatpush2.msra.mxu0 0.0
    %1909 = vmatprep.subr.mxu0 0.0
    %1910 = vmatpush2.msra.mxu0 0.0
    %1911 = vmatprep.subr.mxu0 0.0
    %1912 = vmatpush2.msra.mxu0 0.0
    %1913 = vmatprep.subr.mxu0 0.0
    %1914 = vmatpush2.msra.mxu0 0.0
    %1915 = vmatprep.mubr.f32.mxu0 0.0
    %1916 = vmatmul.mubr.f32.gmra.mxu0 %v1849
    %v1917 = vpop.f32.mrf.mxu0
    %v1918 = vadd.f32 0.0, %v1917
    %v1919 = vpop.f32.mrf.mxu0
    %1920 = vdwg.mxu0
    %v1922 = vsel %vm1555, %v1544, 0
    %1924 = vmatprep.subr.mxu0 0.0
    %1925 = vmatpush1.msra.mxu0 0.0
    %1926 = vmatprep.subr.mxu0 0.0
    %1927 = vmatpush1.msra.mxu0 0.0
    %1928 = vmatprep.subr.mxu0 0.0
    %1929 = vmatpush1.msra.mxu0 0.0
    %1930 = vmatprep.subr.mxu0 0.0
    %1931 = vmatpush1.msra.mxu0 0.0
    %1932 = vmatprep.subr.mxu0 0.0
    %1933 = vmatpush1.msra.mxu0 0.0
    %1934 = vmatprep.subr.mxu0 0.0
    %1935 = vmatpush1.msra.mxu0 0.0
    %1936 = vmatprep.subr.mxu0 0.0
    %1937 = vmatpush1.msra.mxu0 0.0
    %1938 = vmatprep.subr.mxu0 0.0
    %1939 = vmatpush1.msra.mxu0 0.0
    %1940 = vmatprep.subr.mxu0 0.0
    %1941 = vmatpush1.msra.mxu0 0.0
    %1942 = vmatprep.subr.mxu0 0.0
    %1943 = vmatpush1.msra.mxu0 0.0
    %1944 = vmatprep.subr.mxu0 0.0
    %1945 = vmatpush1.msra.mxu0 0.0
    %1946 = vmatprep.subr.mxu0 0.0
    %1947 = vmatpush1.msra.mxu0 0.0
    %1948 = vmatprep.subr.mxu0 0.0
    %1949 = vmatpush1.msra.mxu0 0.0
    %1950 = vmatprep.subr.mxu0 0.0
    %1951 = vmatpush1.msra.mxu0 0.0
    %1952 = vmatprep.subr.mxu0 0.0
    %1953 = vmatpush1.msra.mxu0 0.0
    %1954 = vmatprep.subr.mxu0 0.0
    %1955 = vmatpush1.msra.mxu0 %v166
    %1956 = vmatprep.subr.mxu0 0.0
    %1957 = vmatpush2.msra.mxu0 0.0
    %1958 = vmatprep.subr.mxu0 0.0
    %1959 = vmatpush2.msra.mxu0 0.0
    %1960 = vmatprep.subr.mxu0 0.0
    %1961 = vmatpush2.msra.mxu0 0.0
    %1962 = vmatprep.subr.mxu0 0.0
    %1963 = vmatpush2.msra.mxu0 0.0
    %1964 = vmatprep.subr.mxu0 0.0
    %1965 = vmatpush2.msra.mxu0 0.0
    %1966 = vmatprep.subr.mxu0 0.0
    %1967 = vmatpush2.msra.mxu0 0.0
    %1968 = vmatprep.subr.mxu0 0.0
    %1969 = vmatpush2.msra.mxu0 0.0
    %1970 = vmatprep.subr.mxu0 0.0
    %1971 = vmatpush2.msra.mxu0 0.0
    %1972 = vmatprep.subr.mxu0 0.0
    %1973 = vmatpush2.msra.mxu0 0.0
    %1974 = vmatprep.subr.mxu0 0.0
    %1975 = vmatpush2.msra.mxu0 0.0
    %1976 = vmatprep.subr.mxu0 0.0
    %1977 = vmatpush2.msra.mxu0 0.0
    %1978 = vmatprep.subr.mxu0 0.0
    %1979 = vmatpush2.msra.mxu0 0.0
    %1980 = vmatprep.subr.mxu0 0.0
    %1981 = vmatpush2.msra.mxu0 0.0
    %1982 = vmatprep.subr.mxu0 0.0
    %1983 = vmatpush2.msra.mxu0 0.0
    %1984 = vmatprep.subr.mxu0 0.0
    %1985 = vmatpush2.msra.mxu0 0.0
    %1986 = vmatprep.subr.mxu0 0.0
    %1987 = vmatpush2.msra.mxu0 0.0
    %1988 = vmatprep.mubr.f32.mxu0 0.0
    %1989 = vmatmul.mubr.f32.gmra.mxu0 %v1922
    %v1990 = vpop.f32.mrf.mxu0
    %v1991 = vadd.f32 0.0, %v1990
    %v1992 = vpop.f32.mrf.mxu0
    %1993 = vdwg.mxu0
    %v1995 = vsel %vm1555, %v1545, 0
    %1997 = vmatprep.subr.mxu0 0.0
    %1998 = vmatpush1.msra.mxu0 0.0
    %1999 = vmatprep.subr.mxu0 0.0
    %2000 = vmatpush1.msra.mxu0 0.0
    %2001 = vmatprep.subr.mxu0 0.0
    %2002 = vmatpush1.msra.mxu0 0.0
    %2003 = vmatprep.subr.mxu0 0.0
    %2004 = vmatpush1.msra.mxu0 0.0
    %2005 = vmatprep.subr.mxu0 0.0
    %2006 = vmatpush1.msra.mxu0 0.0
    %2007 = vmatprep.subr.mxu0 0.0
    %2008 = vmatpush1.msra.mxu0 0.0
    %2009 = vmatprep.subr.mxu0 0.0
    %2010 = vmatpush1.msra.mxu0 0.0
    %2011 = vmatprep.subr.mxu0 0.0
    %2012 = vmatpush1.msra.mxu0 0.0
    %2013 = vmatprep.subr.mxu0 0.0
    %2014 = vmatpush1.msra.mxu0 0.0
    %2015 = vmatprep.subr.mxu0 0.0
    %2016 = vmatpush1.msra.mxu0 0.0
    %2017 = vmatprep.subr.mxu0 0.0
    %2018 = vmatpush1.msra.mxu0 0.0
    %2019 = vmatprep.subr.mxu0 0.0
    %2020 = vmatpush1.msra.mxu0 0.0
    %2021 = vmatprep.subr.mxu0 0.0
    %2022 = vmatpush1.msra.mxu0 0.0
    %2023 = vmatprep.subr.mxu0 0.0
    %2024 = vmatpush1.msra.mxu0 0.0
    %2025 = vmatprep.subr.mxu0 0.0
    %2026 = vmatpush1.msra.mxu0 0.0
    %2027 = vmatprep.subr.mxu0 0.0
    %2028 = vmatpush1.msra.mxu0 %v167
    %2029 = vmatprep.subr.mxu0 0.0
    %2030 = vmatpush2.msra.mxu0 0.0
    %2031 = vmatprep.subr.mxu0 0.0
    %2032 = vmatpush2.msra.mxu0 0.0
    %2033 = vmatprep.subr.mxu0 0.0
    %2034 = vmatpush2.msra.mxu0 0.0
    %2035 = vmatprep.subr.mxu0 0.0
    %2036 = vmatpush2.msra.mxu0 0.0
    %2037 = vmatprep.subr.mxu0 0.0
    %2038 = vmatpush2.msra.mxu0 0.0
    %2039 = vmatprep.subr.mxu0 0.0
    %2040 = vmatpush2.msra.mxu0 0.0
    %2041 = vmatprep.subr.mxu0 0.0
    %2042 = vmatpush2.msra.mxu0 0.0
    %2043 = vmatprep.subr.mxu0 0.0
    %2044 = vmatpush2.msra.mxu0 0.0
    %2045 = vmatprep.subr.mxu0 0.0
    %2046 = vmatpush2.msra.mxu0 0.0
    %2047 = vmatprep.subr.mxu0 0.0
    %2048 = vmatpush2.msra.mxu0 0.0
    %2049 = vmatprep.subr.mxu0 0.0
    %2050 = vmatpush2.msra.mxu0 0.0
    %2051 = vmatprep.subr.mxu0 0.0
    %2052 = vmatpush2.msra.mxu0 0.0
    %2053 = vmatprep.subr.mxu0 0.0
    %2054 = vmatpush2.msra.mxu0 0.0
    %2055 = vmatprep.subr.mxu0 0.0
    %2056 = vmatpush2.msra.mxu0 0.0
    %2057 = vmatprep.subr.mxu0 0.0
    %2058 = vmatpush2.msra.mxu0 0.0
    %2059 = vmatprep.subr.mxu0 0.0
    %2060 = vmatpush2.msra.mxu0 0.0
    %2061 = vmatprep.mubr.f32.mxu0 0.0
    %2062 = vmatmul.mubr.f32.gmra.mxu0 %v1995
    %v2063 = vpop.f32.mrf.mxu0
    %v2064 = vadd.f32 0.0, %v2063
    %v2065 = vpop.f32.mrf.mxu0
    %2066 = vdwg.mxu0
    %v2068 = vsel %vm1555, %v1546, 0
    %2070 = vmatprep.subr.mxu0 0.0
    %2071 = vmatpush1.msra.mxu0 0.0
    %2072 = vmatprep.subr.mxu0 0.0
    %2073 = vmatpush1.msra.mxu0 0.0
    %2074 = vmatprep.subr.mxu0 0.0
    %2075 = vmatpush1.msra.mxu0 0.0
    %2076 = vmatprep.subr.mxu0 0.0
    %2077 = vmatpush1.msra.mxu0 0.0
    %2078 = vmatprep.subr.mxu0 0.0
    %2079 = vmatpush1.msra.mxu0 0.0
    %2080 = vmatprep.subr.mxu0 0.0
    %2081 = vmatpush1.msra.mxu0 0.0
    %2082 = vmatprep.subr.mxu0 0.0
    %2083 = vmatpush1.msra.mxu0 0.0
    %2084 = vmatprep.subr.mxu0 0.0
    %2085 = vmatpush1.msra.mxu0 0.0
    %2086 = vmatprep.subr.mxu0 0.0
    %2087 = vmatpush1.msra.mxu0 0.0
    %2088 = vmatprep.subr.mxu0 0.0
    %2089 = vmatpush1.msra.mxu0 0.0
    %2090 = vmatprep.subr.mxu0 0.0
    %2091 = vmatpush1.msra.mxu0 0.0
    %2092 = vmatprep.subr.mxu0 0.0
    %2093 = vmatpush1.msra.mxu0 0.0
    %2094 = vmatprep.subr.mxu0 0.0
    %2095 = vmatpush1.msra.mxu0 0.0
    %2096 = vmatprep.subr.mxu0 0.0
    %2097 = vmatpush1.msra.mxu0 0.0
    %2098 = vmatprep.subr.mxu0 0.0
    %2099 = vmatpush1.msra.mxu0 0.0
    %2100 = vmatprep.subr.mxu0 0.0
    %2101 = vmatpush1.msra.mxu0 %v168
    %2102 = vmatprep.subr.mxu0 0.0
    %2103 = vmatpush2.msra.mxu0 0.0
    %2104 = vmatprep.subr.mxu0 0.0
    %2105 = vmatpush2.msra.mxu0 0.0
    %2106 = vmatprep.subr.mxu0 0.0
    %2107 = vmatpush2.msra.mxu0 0.0
    %2108 = vmatprep.subr.mxu0 0.0
    %2109 = vmatpush2.msra.mxu0 0.0
    %2110 = vmatprep.subr.mxu0 0.0
    %2111 = vmatpush2.msra.mxu0 0.0
    %2112 = vmatprep.subr.mxu0 0.0
    %2113 = vmatpush2.msra.mxu0 0.0
    %2114 = vmatprep.subr.mxu0 0.0
    %2115 = vmatpush2.msra.mxu0 0.0
    %2116 = vmatprep.subr.mxu0 0.0
    %2117 = vmatpush2.msra.mxu0 0.0
    %2118 = vmatprep.subr.mxu0 0.0
    %2119 = vmatpush2.msra.mxu0 0.0
    %2120 = vmatprep.subr.mxu0 0.0
    %2121 = vmatpush2.msra.mxu0 0.0
    %2122 = vmatprep.subr.mxu0 0.0
    %2123 = vmatpush2.msra.mxu0 0.0
    %2124 = vmatprep.subr.mxu0 0.0
    %2125 = vmatpush2.msra.mxu0 0.0
    %2126 = vmatprep.subr.mxu0 0.0
    %2127 = vmatpush2.msra.mxu0 0.0
    %2128 = vmatprep.subr.mxu0 0.0
    %2129 = vmatpush2.msra.mxu0 0.0
    %2130 = vmatprep.subr.mxu0 0.0
    %2131 = vmatpush2.msra.mxu0 0.0
    %2132 = vmatprep.subr.mxu0 0.0
    %2133 = vmatpush2.msra.mxu0 0.0
    %2134 = vmatprep.mubr.f32.mxu0 0.0
    %2135 = vmatmul.mubr.f32.gmra.mxu0 %v2068
    %v2136 = vpop.f32.mrf.mxu0
    %v2137 = vadd.f32 0.0, %v2136
    %v2138 = vpop.f32.mrf.mxu0
    %2139 = vdwg.mxu0
    %v2141 = vsel %vm1555, %v1547, 0
    %2143 = vmatprep.subr.mxu0 0.0
    %2144 = vmatpush1.msra.mxu0 0.0
    %2145 = vmatprep.subr.mxu0 0.0
    %2146 = vmatpush1.msra.mxu0 0.0
    %2147 = vmatprep.subr.mxu0 0.0
    %2148 = vmatpush1.msra.mxu0 0.0
    %2149 = vmatprep.subr.mxu0 0.0
    %2150 = vmatpush1.msra.mxu0 0.0
    %2151 = vmatprep.subr.mxu0 0.0
    %2152 = vmatpush1.msra.mxu0 0.0
    %2153 = vmatprep.subr.mxu0 0.0
    %2154 = vmatpush1.msra.mxu0 0.0
    %2155 = vmatprep.subr.mxu0 0.0
    %2156 = vmatpush1.msra.mxu0 0.0
    %2157 = vmatprep.subr.mxu0 0.0
    %2158 = vmatpush1.msra.mxu0 0.0
    %2159 = vmatprep.subr.mxu0 0.0
    %2160 = vmatpush1.msra.mxu0 0.0
    %2161 = vmatprep.subr.mxu0 0.0
    %2162 = vmatpush1.msra.mxu0 0.0
    %2163 = vmatprep.subr.mxu0 0.0
    %2164 = vmatpush1.msra.mxu0 0.0
    %2165 = vmatprep.subr.mxu0 0.0
    %2166 = vmatpush1.msra.mxu0 0.0
    %2167 = vmatprep.subr.mxu0 0.0
    %2168 = vmatpush1.msra.mxu0 0.0
    %2169 = vmatprep.subr.mxu0 0.0
    %2170 = vmatpush1.msra.mxu0 0.0
    %2171 = vmatprep.subr.mxu0 0.0
    %2172 = vmatpush1.msra.mxu0 0.0
    %2173 = vmatprep.subr.mxu0 0.0
    %2174 = vmatpush1.msra.mxu0 %v169
    %2175 = vmatprep.subr.mxu0 0.0
    %2176 = vmatpush2.msra.mxu0 0.0
    %2177 = vmatprep.subr.mxu0 0.0
    %2178 = vmatpush2.msra.mxu0 0.0
    %2179 = vmatprep.subr.mxu0 0.0
    %2180 = vmatpush2.msra.mxu0 0.0
    %2181 = vmatprep.subr.mxu0 0.0
    %2182 = vmatpush2.msra.mxu0 0.0
    %2183 = vmatprep.subr.mxu0 0.0
    %2184 = vmatpush2.msra.mxu0 0.0
    %2185 = vmatprep.subr.mxu0 0.0
    %2186 = vmatpush2.msra.mxu0 0.0
    %2187 = vmatprep.subr.mxu0 0.0
    %2188 = vmatpush2.msra.mxu0 0.0
    %2189 = vmatprep.subr.mxu0 0.0
    %2190 = vmatpush2.msra.mxu0 0.0
    %2191 = vmatprep.subr.mxu0 0.0
    %2192 = vmatpush2.msra.mxu0 0.0
    %2193 = vmatprep.subr.mxu0 0.0
    %2194 = vmatpush2.msra.mxu0 0.0
    %2195 = vmatprep.subr.mxu0 0.0
    %2196 = vmatpush2.msra.mxu0 0.0
    %2197 = vmatprep.subr.mxu0 0.0
    %2198 = vmatpush2.msra.mxu0 0.0
    %2199 = vmatprep.subr.mxu0 0.0
    %2200 = vmatpush2.msra.mxu0 0.0
    %2201 = vmatprep.subr.mxu0 0.0
    %2202 = vmatpush2.msra.mxu0 0.0
    %2203 = vmatprep.subr.mxu0 0.0
    %2204 = vmatpush2.msra.mxu0 0.0
    %2205 = vmatprep.subr.mxu0 0.0
    %2206 = vmatpush2.msra.mxu0 0.0
    %2207 = vmatprep.mubr.f32.mxu0 0.0
    %2208 = vmatmul.mubr.f32.gmra.mxu0 %v2141
    %v2209 = vpop.f32.mrf.mxu0
    %v2210 = vadd.f32 0.0, %v2209
    %v2211 = vpop.f32.mrf.mxu0
    %2212 = vdwg.mxu0
    %v2214 = vsel %vm1555, %v1548, 0
    %2216 = vmatprep.subr.mxu0 0.0
    %2217 = vmatpush1.msra.mxu0 0.0
    %2218 = vmatprep.subr.mxu0 0.0
    %2219 = vmatpush1.msra.mxu0 0.0
    %2220 = vmatprep.subr.mxu0 0.0
    %2221 = vmatpush1.msra.mxu0 0.0
    %2222 = vmatprep.subr.mxu0 0.0
    %2223 = vmatpush1.msra.mxu0 0.0
    %2224 = vmatprep.subr.mxu0 0.0
    %2225 = vmatpush1.msra.mxu0 0.0
    %2226 = vmatprep.subr.mxu0 0.0
    %2227 = vmatpush1.msra.mxu0 0.0
    %2228 = vmatprep.subr.mxu0 0.0
    %2229 = vmatpush1.msra.mxu0 0.0
    %2230 = vmatprep.subr.mxu0 0.0
    %2231 = vmatpush1.msra.mxu0 0.0
    %2232 = vmatprep.subr.mxu0 0.0
    %2233 = vmatpush1.msra.mxu0 0.0
    %2234 = vmatprep.subr.mxu0 0.0
    %2235 = vmatpush1.msra.mxu0 0.0
    %2236 = vmatprep.subr.mxu0 0.0
    %2237 = vmatpush1.msra.mxu0 0.0
    %2238 = vmatprep.subr.mxu0 0.0
    %2239 = vmatpush1.msra.mxu0 0.0
    %2240 = vmatprep.subr.mxu0 0.0
    %2241 = vmatpush1.msra.mxu0 0.0
    %2242 = vmatprep.subr.mxu0 0.0
    %2243 = vmatpush1.msra.mxu0 0.0
    %2244 = vmatprep.subr.mxu0 0.0
    %2245 = vmatpush1.msra.mxu0 0.0
    %2246 = vmatprep.subr.mxu0 0.0
    %2247 = vmatpush1.msra.mxu0 %v170
    %2248 = vmatprep.subr.mxu0 0.0
    %2249 = vmatpush2.msra.mxu0 0.0
    %2250 = vmatprep.subr.mxu0 0.0
    %2251 = vmatpush2.msra.mxu0 0.0
    %2252 = vmatprep.subr.mxu0 0.0
    %2253 = vmatpush2.msra.mxu0 0.0
    %2254 = vmatprep.subr.mxu0 0.0
    %2255 = vmatpush2.msra.mxu0 0.0
    %2256 = vmatprep.subr.mxu0 0.0
    %2257 = vmatpush2.msra.mxu0 0.0
    %2258 = vmatprep.subr.mxu0 0.0
    %2259 = vmatpush2.msra.mxu0 0.0
    %2260 = vmatprep.subr.mxu0 0.0
    %2261 = vmatpush2.msra.mxu0 0.0
    %2262 = vmatprep.subr.mxu0 0.0
    %2263 = vmatpush2.msra.mxu0 0.0
    %2264 = vmatprep.subr.mxu0 0.0
    %2265 = vmatpush2.msra.mxu0 0.0
    %2266 = vmatprep.subr.mxu0 0.0
    %2267 = vmatpush2.msra.mxu0 0.0
    %2268 = vmatprep.subr.mxu0 0.0
    %2269 = vmatpush2.msra.mxu0 0.0
    %2270 = vmatprep.subr.mxu0 0.0
    %2271 = vmatpush2.msra.mxu0 0.0
    %2272 = vmatprep.subr.mxu0 0.0
    %2273 = vmatpush2.msra.mxu0 0.0
    %2274 = vmatprep.subr.mxu0 0.0
    %2275 = vmatpush2.msra.mxu0 0.0
    %2276 = vmatprep.subr.mxu0 0.0
    %2277 = vmatpush2.msra.mxu0 0.0
    %2278 = vmatprep.subr.mxu0 0.0
    %2279 = vmatpush2.msra.mxu0 0.0
    %2280 = vmatprep.mubr.f32.mxu0 0.0
    %2281 = vmatmul.mubr.f32.gmra.mxu0 %v2214
    %v2282 = vpop.f32.mrf.mxu0
    %v2283 = vadd.f32 0.0, %v2282
    %v2284 = vpop.f32.mrf.mxu0
    %2285 = vdwg.mxu0
    %v2287 = vsel %vm1555, %v1549, 0
    %2289 = vmatprep.subr.mxu0 0.0
    %2290 = vmatpush1.msra.mxu0 0.0
    %2291 = vmatprep.subr.mxu0 0.0
    %2292 = vmatpush1.msra.mxu0 0.0
    %2293 = vmatprep.subr.mxu0 0.0
    %2294 = vmatpush1.msra.mxu0 0.0
    %2295 = vmatprep.subr.mxu0 0.0
    %2296 = vmatpush1.msra.mxu0 0.0
    %2297 = vmatprep.subr.mxu0 0.0
    %2298 = vmatpush1.msra.mxu0 0.0
    %2299 = vmatprep.subr.mxu0 0.0
    %2300 = vmatpush1.msra.mxu0 0.0
    %2301 = vmatprep.subr.mxu0 0.0
    %2302 = vmatpush1.msra.mxu0 0.0
    %2303 = vmatprep.subr.mxu0 0.0
    %2304 = vmatpush1.msra.mxu0 0.0
    %2305 = vmatprep.subr.mxu0 0.0
    %2306 = vmatpush1.msra.mxu0 0.0
    %2307 = vmatprep.subr.mxu0 0.0
    %2308 = vmatpush1.msra.mxu0 0.0
    %2309 = vmatprep.subr.mxu0 0.0
    %2310 = vmatpush1.msra.mxu0 0.0
    %2311 = vmatprep.subr.mxu0 0.0
    %2312 = vmatpush1.msra.mxu0 0.0
    %2313 = vmatprep.subr.mxu0 0.0
    %2314 = vmatpush1.msra.mxu0 0.0
    %2315 = vmatprep.subr.mxu0 0.0
    %2316 = vmatpush1.msra.mxu0 0.0
    %2317 = vmatprep.subr.mxu0 0.0
    %2318 = vmatpush1.msra.mxu0 0.0
    %2319 = vmatprep.subr.mxu0 0.0
    %2320 = vmatpush1.msra.mxu0 %v171
    %2321 = vmatprep.subr.mxu0 0.0
    %2322 = vmatpush2.msra.mxu0 0.0
    %2323 = vmatprep.subr.mxu0 0.0
    %2324 = vmatpush2.msra.mxu0 0.0
    %2325 = vmatprep.subr.mxu0 0.0
    %2326 = vmatpush2.msra.mxu0 0.0
    %2327 = vmatprep.subr.mxu0 0.0
    %2328 = vmatpush2.msra.mxu0 0.0
    %2329 = vmatprep.subr.mxu0 0.0
    %2330 = vmatpush2.msra.mxu0 0.0
    %2331 = vmatprep.subr.mxu0 0.0
    %2332 = vmatpush2.msra.mxu0 0.0
    %2333 = vmatprep.subr.mxu0 0.0
    %2334 = vmatpush2.msra.mxu0 0.0
    %2335 = vmatprep.subr.mxu0 0.0
    %2336 = vmatpush2.msra.mxu0 0.0
    %2337 = vmatprep.subr.mxu0 0.0
    %2338 = vmatpush2.msra.mxu0 0.0
    %2339 = vmatprep.subr.mxu0 0.0
    %2340 = vmatpush2.msra.mxu0 0.0
    %2341 = vmatprep.subr.mxu0 0.0
    %2342 = vmatpush2.msra.mxu0 0.0
    %2343 = vmatprep.subr.mxu0 0.0
    %2344 = vmatpush2.msra.mxu0 0.0
    %2345 = vmatprep.subr.mxu0 0.0
    %2346 = vmatpush2.msra.mxu0 0.0
    %2347 = vmatprep.subr.mxu0 0.0
    %2348 = vmatpush2.msra.mxu0 0.0
    %2349 = vmatprep.subr.mxu0 0.0
    %2350 = vmatpush2.msra.mxu0 0.0
    %2351 = vmatprep.subr.mxu0 0.0
    %2352 = vmatpush2.msra.mxu0 0.0
    %2353 = vmatprep.mubr.f32.mxu0 0.0
    %2354 = vmatmul.mubr.f32.gmra.mxu0 %v2287
    %v2355 = vpop.f32.mrf.mxu0
    %v2356 = vadd.f32 0.0, %v2355
    %v2357 = vpop.f32.mrf.mxu0
    %2358 = vdwg.mxu0
    %v2360 = vsel %vm1555, %v1550, 0
    %2362 = vmatprep.subr.mxu0 0.0
    %2363 = vmatpush1.msra.mxu0 0.0
    %2364 = vmatprep.subr.mxu0 0.0
    %2365 = vmatpush1.msra.mxu0 0.0
    %2366 = vmatprep.subr.mxu0 0.0
    %2367 = vmatpush1.msra.mxu0 0.0
    %2368 = vmatprep.subr.mxu0 0.0
    %2369 = vmatpush1.msra.mxu0 0.0
    %2370 = vmatprep.subr.mxu0 0.0
    %2371 = vmatpush1.msra.mxu0 0.0
    %2372 = vmatprep.subr.mxu0 0.0
    %2373 = vmatpush1.msra.mxu0 0.0
    %2374 = vmatprep.subr.mxu0 0.0
    %2375 = vmatpush1.msra.mxu0 0.0
    %2376 = vmatprep.subr.mxu0 0.0
    %2377 = vmatpush1.msra.mxu0 0.0
    %2378 = vmatprep.subr.mxu0 0.0
    %2379 = vmatpush1.msra.mxu0 0.0
    %2380 = vmatprep.subr.mxu0 0.0
    %2381 = vmatpush1.msra.mxu0 0.0
    %2382 = vmatprep.subr.mxu0 0.0
    %2383 = vmatpush1.msra.mxu0 0.0
    %2384 = vmatprep.subr.mxu0 0.0
    %2385 = vmatpush1.msra.mxu0 0.0
    %2386 = vmatprep.subr.mxu0 0.0
    %2387 = vmatpush1.msra.mxu0 0.0
    %2388 = vmatprep.subr.mxu0 0.0
    %2389 = vmatpush1.msra.mxu0 0.0
    %2390 = vmatprep.subr.mxu0 0.0
    %2391 = vmatpush1.msra.mxu0 0.0
    %2392 = vmatprep.subr.mxu0 0.0
    %2393 = vmatpush1.msra.mxu0 %v172
    %2394 = vmatprep.subr.mxu0 0.0
    %2395 = vmatpush2.msra.mxu0 0.0
    %2396 = vmatprep.subr.mxu0 0.0
    %2397 = vmatpush2.msra.mxu0 0.0
    %2398 = vmatprep.subr.mxu0 0.0
    %2399 = vmatpush2.msra.mxu0 0.0
    %2400 = vmatprep.subr.mxu0 0.0
    %2401 = vmatpush2.msra.mxu0 0.0
    %2402 = vmatprep.subr.mxu0 0.0
    %2403 = vmatpush2.msra.mxu0 0.0
    %2404 = vmatprep.subr.mxu0 0.0
    %2405 = vmatpush2.msra.mxu0 0.0
    %2406 = vmatprep.subr.mxu0 0.0
    %2407 = vmatpush2.msra.mxu0 0.0
    %2408 = vmatprep.subr.mxu0 0.0
    %2409 = vmatpush2.msra.mxu0 0.0
    %2410 = vmatprep.subr.mxu0 0.0
    %2411 = vmatpush2.msra.mxu0 0.0
    %2412 = vmatprep.subr.mxu0 0.0
    %2413 = vmatpush2.msra.mxu0 0.0
    %2414 = vmatprep.subr.mxu0 0.0
    %2415 = vmatpush2.msra.mxu0 0.0
    %2416 = vmatprep.subr.mxu0 0.0
    %2417 = vmatpush2.msra.mxu0 0.0
    %2418 = vmatprep.subr.mxu0 0.0
    %2419 = vmatpush2.msra.mxu0 0.0
    %2420 = vmatprep.subr.mxu0 0.0
    %2421 = vmatpush2.msra.mxu0 0.0
    %2422 = vmatprep.subr.mxu0 0.0
    %2423 = vmatpush2.msra.mxu0 0.0
    %2424 = vmatprep.subr.mxu0 0.0
    %2425 = vmatpush2.msra.mxu0 0.0
    %2426 = vmatprep.mubr.f32.mxu0 0.0
    %2427 = vmatmul.mubr.f32.gmra.mxu0 %v2360
    %v2428 = vpop.f32.mrf.mxu0
    %v2429 = vadd.f32 0.0, %v2428
    %v2430 = vpop.f32.mrf.mxu0
    %2431 = vdwg.mxu0
    %v2433 = vsel %vm1555, %v1551, 0
    %2435 = vmatprep.subr.mxu0 0.0
    %2436 = vmatpush1.msra.mxu0 0.0
    %2437 = vmatprep.subr.mxu0 0.0
    %2438 = vmatpush1.msra.mxu0 0.0
    %2439 = vmatprep.subr.mxu0 0.0
    %2440 = vmatpush1.msra.mxu0 0.0
    %2441 = vmatprep.subr.mxu0 0.0
    %2442 = vmatpush1.msra.mxu0 0.0
    %2443 = vmatprep.subr.mxu0 0.0
    %2444 = vmatpush1.msra.mxu0 0.0
    %2445 = vmatprep.subr.mxu0 0.0
    %2446 = vmatpush1.msra.mxu0 0.0
    %2447 = vmatprep.subr.mxu0 0.0
    %2448 = vmatpush1.msra.mxu0 0.0
    %2449 = vmatprep.subr.mxu0 0.0
    %2450 = vmatpush1.msra.mxu0 0.0
    %2451 = vmatprep.subr.mxu0 0.0
    %2452 = vmatpush1.msra.mxu0 0.0
    %2453 = vmatprep.subr.mxu0 0.0
    %2454 = vmatpush1.msra.mxu0 0.0
    %2455 = vmatprep.subr.mxu0 0.0
    %2456 = vmatpush1.msra.mxu0 0.0
    %2457 = vmatprep.subr.mxu0 0.0
    %2458 = vmatpush1.msra.mxu0 0.0
    %2459 = vmatprep.subr.mxu0 0.0
    %2460 = vmatpush1.msra.mxu0 0.0
    %2461 = vmatprep.subr.mxu0 0.0
    %2462 = vmatpush1.msra.mxu0 0.0
    %2463 = vmatprep.subr.mxu0 0.0
    %2464 = vmatpush1.msra.mxu0 0.0
    %2465 = vmatprep.subr.mxu0 0.0
    %2466 = vmatpush1.msra.mxu0 %v173
    %2467 = vmatprep.subr.mxu0 0.0
    %2468 = vmatpush2.msra.mxu0 0.0
    %2469 = vmatprep.subr.mxu0 0.0
    %2470 = vmatpush2.msra.mxu0 0.0
    %2471 = vmatprep.subr.mxu0 0.0
    %2472 = vmatpush2.msra.mxu0 0.0
    %2473 = vmatprep.subr.mxu0 0.0
    %2474 = vmatpush2.msra.mxu0 0.0
    %2475 = vmatprep.subr.mxu0 0.0
    %2476 = vmatpush2.msra.mxu0 0.0
    %2477 = vmatprep.subr.mxu0 0.0
    %2478 = vmatpush2.msra.mxu0 0.0
    %2479 = vmatprep.subr.mxu0 0.0
    %2480 = vmatpush2.msra.mxu0 0.0
    %2481 = vmatprep.subr.mxu0 0.0
    %2482 = vmatpush2.msra.mxu0 0.0
    %2483 = vmatprep.subr.mxu0 0.0
    %2484 = vmatpush2.msra.mxu0 0.0
    %2485 = vmatprep.subr.mxu0 0.0
    %2486 = vmatpush2.msra.mxu0 0.0
    %2487 = vmatprep.subr.mxu0 0.0
    %2488 = vmatpush2.msra.mxu0 0.0
    %2489 = vmatprep.subr.mxu0 0.0
    %2490 = vmatpush2.msra.mxu0 0.0
    %2491 = vmatprep.subr.mxu0 0.0
    %2492 = vmatpush2.msra.mxu0 0.0
    %2493 = vmatprep.subr.mxu0 0.0
    %2494 = vmatpush2.msra.mxu0 0.0
    %2495 = vmatprep.subr.mxu0 0.0
    %2496 = vmatpush2.msra.mxu0 0.0
    %2497 = vmatprep.subr.mxu0 0.0
    %2498 = vmatpush2.msra.mxu0 0.0
    %2499 = vmatprep.mubr.f32.mxu0 0.0
    %2500 = vmatmul.mubr.f32.gmra.mxu0 %v2433
    %v2501 = vpop.f32.mrf.mxu0
    %v2502 = vadd.f32 0.0, %v2501
    %v2503 = vpop.f32.mrf.mxu0
    %2504 = vdwg.mxu0
    %v2506 = vsel %vm1555, %v1552, 0
    %2508 = vmatprep.subr.mxu0 0.0
    %2509 = vmatpush1.msra.mxu0 0.0
    %2510 = vmatprep.subr.mxu0 0.0
    %2511 = vmatpush1.msra.mxu0 0.0
    %2512 = vmatprep.subr.mxu0 0.0
    %2513 = vmatpush1.msra.mxu0 0.0
    %2514 = vmatprep.subr.mxu0 0.0
    %2515 = vmatpush1.msra.mxu0 0.0
    %2516 = vmatprep.subr.mxu0 0.0
    %2517 = vmatpush1.msra.mxu0 0.0
    %2518 = vmatprep.subr.mxu0 0.0
    %2519 = vmatpush1.msra.mxu0 0.0
    %2520 = vmatprep.subr.mxu0 0.0
    %2521 = vmatpush1.msra.mxu0 0.0
    %2522 = vmatprep.subr.mxu0 0.0
    %2523 = vmatpush1.msra.mxu0 0.0
    %2524 = vmatprep.subr.mxu0 0.0
    %2525 = vmatpush1.msra.mxu0 0.0
    %2526 = vmatprep.subr.mxu0 0.0
    %2527 = vmatpush1.msra.mxu0 0.0
    %2528 = vmatprep.subr.mxu0 0.0
    %2529 = vmatpush1.msra.mxu0 0.0
    %2530 = vmatprep.subr.mxu0 0.0
    %2531 = vmatpush1.msra.mxu0 0.0
    %2532 = vmatprep.subr.mxu0 0.0
    %2533 = vmatpush1.msra.mxu0 0.0
    %2534 = vmatprep.subr.mxu0 0.0
    %2535 = vmatpush1.msra.mxu0 0.0
    %2536 = vmatprep.subr.mxu0 0.0
    %2537 = vmatpush1.msra.mxu0 0.0
    %2538 = vmatprep.subr.mxu0 0.0
    %2539 = vmatpush1.msra.mxu0 %v174
    %2540 = vmatprep.subr.mxu0 0.0
    %2541 = vmatpush2.msra.mxu0 0.0
    %2542 = vmatprep.subr.mxu0 0.0
    %2543 = vmatpush2.msra.mxu0 0.0
    %2544 = vmatprep.subr.mxu0 0.0
    %2545 = vmatpush2.msra.mxu0 0.0
    %2546 = vmatprep.subr.mxu0 0.0
    %2547 = vmatpush2.msra.mxu0 0.0
    %2548 = vmatprep.subr.mxu0 0.0
    %2549 = vmatpush2.msra.mxu0 0.0
    %2550 = vmatprep.subr.mxu0 0.0
    %2551 = vmatpush2.msra.mxu0 0.0
    %2552 = vmatprep.subr.mxu0 0.0
    %2553 = vmatpush2.msra.mxu0 0.0
    %2554 = vmatprep.subr.mxu0 0.0
    %2555 = vmatpush2.msra.mxu0 0.0
    %2556 = vmatprep.subr.mxu0 0.0
    %2557 = vmatpush2.msra.mxu0 0.0
    %2558 = vmatprep.subr.mxu0 0.0
    %2559 = vmatpush2.msra.mxu0 0.0
    %2560 = vmatprep.subr.mxu0 0.0
    %2561 = vmatpush2.msra.mxu0 0.0
    %2562 = vmatprep.subr.mxu0 0.0
    %2563 = vmatpush2.msra.mxu0 0.0
    %2564 = vmatprep.subr.mxu0 0.0
    %2565 = vmatpush2.msra.mxu0 0.0
    %2566 = vmatprep.subr.mxu0 0.0
    %2567 = vmatpush2.msra.mxu0 0.0
    %2568 = vmatprep.subr.mxu0 0.0
    %2569 = vmatpush2.msra.mxu0 0.0
    %2570 = vmatprep.subr.mxu0 0.0
    %2571 = vmatpush2.msra.mxu0 0.0
    %2572 = vmatprep.mubr.f32.mxu0 0.0
    %2573 = vmatmul.mubr.f32.gmra.mxu0 %v2506
    %v2574 = vpop.f32.mrf.mxu0
    %v2575 = vadd.f32 0.0, %v2574
    %v2576 = vpop.f32.mrf.mxu0
    %2577 = vdwg.mxu0
    %v2579 = vsel %vm1555, %v1553, 0
    %2581 = vmatprep.subr.mxu0 0.0
    %2582 = vmatpush1.msra.mxu0 0.0
    %2583 = vmatprep.subr.mxu0 0.0
    %2584 = vmatpush1.msra.mxu0 0.0
    %2585 = vmatprep.subr.mxu0 0.0
    %2586 = vmatpush1.msra.mxu0 0.0
    %2587 = vmatprep.subr.mxu0 0.0
    %2588 = vmatpush1.msra.mxu0 0.0
    %2589 = vmatprep.subr.mxu0 0.0
    %2590 = vmatpush1.msra.mxu0 0.0
    %2591 = vmatprep.subr.mxu0 0.0
    %2592 = vmatpush1.msra.mxu0 0.0
    %2593 = vmatprep.subr.mxu0 0.0
    %2594 = vmatpush1.msra.mxu0 0.0
    %2595 = vmatprep.subr.mxu0 0.0
    %2596 = vmatpush1.msra.mxu0 0.0
    %2597 = vmatprep.subr.mxu0 0.0
    %2598 = vmatpush1.msra.mxu0 0.0
    %2599 = vmatprep.subr.mxu0 0.0
    %2600 = vmatpush1.msra.mxu0 0.0
    %2601 = vmatprep.subr.mxu0 0.0
    %2602 = vmatpush1.msra.mxu0 0.0
    %2603 = vmatprep.subr.mxu0 0.0
    %2604 = vmatpush1.msra.mxu0 0.0
    %2605 = vmatprep.subr.mxu0 0.0
    %2606 = vmatpush1.msra.mxu0 0.0
    %2607 = vmatprep.subr.mxu0 0.0
    %2608 = vmatpush1.msra.mxu0 0.0
    %2609 = vmatprep.subr.mxu0 0.0
    %2610 = vmatpush1.msra.mxu0 0.0
    %2611 = vmatprep.subr.mxu0 0.0
    %2612 = vmatpush1.msra.mxu0 %v175
    %2613 = vmatprep.subr.mxu0 0.0
    %2614 = vmatpush2.msra.mxu0 0.0
    %2615 = vmatprep.subr.mxu0 0.0
    %2616 = vmatpush2.msra.mxu0 0.0
    %2617 = vmatprep.subr.mxu0 0.0
    %2618 = vmatpush2.msra.mxu0 0.0
    %2619 = vmatprep.subr.mxu0 0.0
    %2620 = vmatpush2.msra.mxu0 0.0
    %2621 = vmatprep.subr.mxu0 0.0
    %2622 = vmatpush2.msra.mxu0 0.0
    %2623 = vmatprep.subr.mxu0 0.0
    %2624 = vmatpush2.msra.mxu0 0.0
    %2625 = vmatprep.subr.mxu0 0.0
    %2626 = vmatpush2.msra.mxu0 0.0
    %2627 = vmatprep.subr.mxu0 0.0
    %2628 = vmatpush2.msra.mxu0 0.0
    %2629 = vmatprep.subr.mxu0 0.0
    %2630 = vmatpush2.msra.mxu0 0.0
    %2631 = vmatprep.subr.mxu0 0.0
    %2632 = vmatpush2.msra.mxu0 0.0
    %2633 = vmatprep.subr.mxu0 0.0
    %2634 = vmatpush2.msra.mxu0 0.0
    %2635 = vmatprep.subr.mxu0 0.0
    %2636 = vmatpush2.msra.mxu0 0.0
    %2637 = vmatprep.subr.mxu0 0.0
    %2638 = vmatpush2.msra.mxu0 0.0
    %2639 = vmatprep.subr.mxu0 0.0
    %2640 = vmatpush2.msra.mxu0 0.0
    %2641 = vmatprep.subr.mxu0 0.0
    %2642 = vmatpush2.msra.mxu0 0.0
    %2643 = vmatprep.subr.mxu0 0.0
    %2644 = vmatpush2.msra.mxu0 0.0
    %2645 = vmatprep.mubr.f32.mxu0 0.0
    %2646 = vmatmul.mubr.f32.gmra.mxu0 %v2579
    %v2647 = vpop.f32.mrf.mxu0
    %v2648 = vadd.f32 0.0, %v2647
    %v2649 = vpop.f32.mrf.mxu0
    %2650 = vdwg.mxu0
    %v2652 = vsel %vm1555, %v1554, 0
    %2654 = vmatprep.subr.mxu0 0.0
    %2655 = vmatpush1.msra.mxu0 0.0
    %2656 = vmatprep.subr.mxu0 0.0
    %2657 = vmatpush1.msra.mxu0 0.0
    %2658 = vmatprep.subr.mxu0 0.0
    %2659 = vmatpush1.msra.mxu0 0.0
    %2660 = vmatprep.subr.mxu0 0.0
    %2661 = vmatpush1.msra.mxu0 0.0
    %2662 = vmatprep.subr.mxu0 0.0
    %2663 = vmatpush1.msra.mxu0 0.0
    %2664 = vmatprep.subr.mxu0 0.0
    %2665 = vmatpush1.msra.mxu0 0.0
    %2666 = vmatprep.subr.mxu0 0.0
    %2667 = vmatpush1.msra.mxu0 0.0
    %2668 = vmatprep.subr.mxu0 0.0
    %2669 = vmatpush1.msra.mxu0 0.0
    %2670 = vmatprep.subr.mxu0 0.0
    %2671 = vmatpush1.msra.mxu0 0.0
    %2672 = vmatprep.subr.mxu0 0.0
    %2673 = vmatpush1.msra.mxu0 0.0
    %2674 = vmatprep.subr.mxu0 0.0
    %2675 = vmatpush1.msra.mxu0 0.0
    %2676 = vmatprep.subr.mxu0 0.0
    %2677 = vmatpush1.msra.mxu0 0.0
    %2678 = vmatprep.subr.mxu0 0.0
    %2679 = vmatpush1.msra.mxu0 0.0
    %2680 = vmatprep.subr.mxu0 0.0
    %2681 = vmatpush1.msra.mxu0 0.0
    %2682 = vmatprep.subr.mxu0 0.0
    %2683 = vmatpush1.msra.mxu0 0.0
    %2684 = vmatprep.subr.mxu0 0.0
    %2685 = vmatpush1.msra.mxu0 %v176
    %2686 = vmatprep.subr.mxu0 0.0
    %2687 = vmatpush2.msra.mxu0 0.0
    %2688 = vmatprep.subr.mxu0 0.0
    %2689 = vmatpush2.msra.mxu0 0.0
    %2690 = vmatprep.subr.mxu0 0.0
    %2691 = vmatpush2.msra.mxu0 0.0
    %2692 = vmatprep.subr.mxu0 0.0
    %2693 = vmatpush2.msra.mxu0 0.0
    %2694 = vmatprep.subr.mxu0 0.0
    %2695 = vmatpush2.msra.mxu0 0.0
    %2696 = vmatprep.subr.mxu0 0.0
    %2697 = vmatpush2.msra.mxu0 0.0
    %2698 = vmatprep.subr.mxu0 0.0
    %2699 = vmatpush2.msra.mxu0 0.0
    %2700 = vmatprep.subr.mxu0 0.0
    %2701 = vmatpush2.msra.mxu0 0.0
    %2702 = vmatprep.subr.mxu0 0.0
    %2703 = vmatpush2.msra.mxu0 0.0
    %2704 = vmatprep.subr.mxu0 0.0
    %2705 = vmatpush2.msra.mxu0 0.0
    %2706 = vmatprep.subr.mxu0 0.0
    %2707 = vmatpush2.msra.mxu0 0.0
    %2708 = vmatprep.subr.mxu0 0.0
    %2709 = vmatpush2.msra.mxu0 0.0
    %2710 = vmatprep.subr.mxu0 0.0
    %2711 = vmatpush2.msra.mxu0 0.0
    %2712 = vmatprep.subr.mxu0 0.0
    %2713 = vmatpush2.msra.mxu0 0.0
    %2714 = vmatprep.subr.mxu0 0.0
    %2715 = vmatpush2.msra.mxu0 0.0
    %2716 = vmatprep.subr.mxu0 0.0
    %2717 = vmatpush2.msra.mxu0 0.0
    %2718 = vmatprep.mubr.f32.mxu0 0.0
    %2719 = vmatmul.mubr.f32.gmra.mxu0 %v2652
    %v2720 = vpop.f32.mrf.mxu0
    %v2721 = vadd.f32 0.0, %v2720
    %v2722 = vpop.f32.mrf.mxu0
    %2723 = vdwg.mxu0
    %v2724 = vld [vmem:[#allocation7] sm:$0xff]
    %v2725 = vld [vmem:[#allocation7 + $0x8] sm:$0xff]
    %v2726 = vld [vmem:[#allocation7 + $0x10] sm:$0xff]
    %v2727 = vld [vmem:[#allocation7 + $0x18] sm:$0xff]
    %v2728 = vld [vmem:[%s3] sm:$0x1]
    %v2730 = vlaneseq
    %v2731 = vshrl.u32 %v2730, 7
    %v2732 = vsub.s32 0, %v2731
    %v2733 = vrot.slane %v2728, %v2732
    %v2751 = vrot.slane %v1699, 7
    %vm2752 = vcmask 1041409
    %v2753 = vsel %vm2752, %v2751, %v1626
    %v2754 = vrot.slane %v1772, 6
    %vm2755 = vcmask 1042434
    %v2756 = vsel %vm2755, %v2754, %v2753
    %v2757 = vrot.slane %v1845, 5
    %vm2758 = vcmask 1043459
    %v2759 = vsel %vm2758, %v2757, %v2756
    %v2760 = vrot.slane %v1918, 4
    %vm2761 = vcmask 1044484
    %v2762 = vsel %vm2761, %v2760, %v2759
    %v2763 = vrot.slane %v1991, 3
    %vm2764 = vcmask 1045509
    %v2765 = vsel %vm2764, %v2763, %v2762
    %v2766 = vrot.slane %v2064, 2
    %vm2767 = vcmask 1046534
    %v2768 = vsel %vm2767, %v2766, %v2765
    %v2769 = vrot.slane %v2137, 1
    %vm2770 = vcmask 1047559
    %v2771 = vsel %vm2770, %v2769, %v2768
    %v2772 = vrot.slane %v2283, 7
    %v2773 = vsel %vm2752, %v2772, %v2210
    %v2774 = vrot.slane %v2356, 6
    %v2775 = vsel %vm2755, %v2774, %v2773
    %v2776 = vrot.slane %v2429, 5
    %v2777 = vsel %vm2758, %v2776, %v2775
    %v2778 = vrot.slane %v2502, 4
    %v2779 = vsel %vm2761, %v2778, %v2777
    %v2780 = vrot.slane %v2575, 3
    %v2781 = vsel %vm2764, %v2780, %v2779
    %v2782 = vrot.slane %v2648, 2
    %v2783 = vsel %vm2767, %v2782, %v2781
    %v2784 = vrot.slane %v2721, 1
    %v2785 = vsel %vm2770, %v2784, %v2783
    %v2786 = vsel %vm177, %v2771, 0
    %v2788 = vsel %vm177, %v2785, 0
    %2790 = vmatprep.subr.mxu0 0.0
    %2791 = vmatpush1.msra.mxu0 0.0
    %2792 = vmatprep.subr.mxu0 0.0
    %2793 = vmatpush1.msra.mxu0 0.0
    %2794 = vmatprep.subr.mxu0 0.0
    %2795 = vmatpush1.msra.mxu0 0.0
    %2796 = vmatprep.subr.mxu0 0.0
    %2797 = vmatpush1.msra.mxu0 0.0
    %2798 = vmatprep.subr.mxu0 0.0
    %2799 = vmatpush1.msra.mxu0 0.0
    %2800 = vmatprep.subr.mxu0 0.0
    %2801 = vmatpush1.msra.mxu0 0.0
    %2802 = vmatprep.subr.mxu0 0.0
    %2803 = vmatpush1.msra.mxu0 0.0
    %2804 = vmatprep.subr.mxu0 0.0
    %2805 = vmatpush1.msra.mxu0 0.0
    %2806 = vmatprep.subr.mxu0 0.0
    %2807 = vmatpush1.msra.mxu0 0.0
    %2808 = vmatprep.subr.mxu0 0.0
    %2809 = vmatpush1.msra.mxu0 0.0
    %2810 = vmatprep.subr.mxu0 0.0
    %2811 = vmatpush1.msra.mxu0 0.0
    %2812 = vmatprep.subr.mxu0 0.0
    %2813 = vmatpush1.msra.mxu0 0.0
    %2814 = vmatprep.subr.mxu0 0.0
    %2815 = vmatpush1.msra.mxu0 %v2727
    %2816 = vmatprep.subr.mxu0 0.0
    %2817 = vmatpush1.msra.mxu0 %v2726
    %2818 = vmatprep.subr.mxu0 0.0
    %2819 = vmatpush1.msra.mxu0 %v2725
    %2820 = vmatprep.subr.mxu0 0.0
    %2821 = vmatpush1.msra.mxu0 %v2724
    %2822 = vmatprep.subr.mxu0 0.0
    %2823 = vmatpush2.msra.mxu0 0.0
    %2824 = vmatprep.subr.mxu0 0.0
    %2825 = vmatpush2.msra.mxu0 0.0
    %2826 = vmatprep.subr.mxu0 0.0
    %2827 = vmatpush2.msra.mxu0 0.0
    %2828 = vmatprep.subr.mxu0 0.0
    %2829 = vmatpush2.msra.mxu0 0.0
    %2830 = vmatprep.subr.mxu0 0.0
    %2831 = vmatpush2.msra.mxu0 0.0
    %2832 = vmatprep.subr.mxu0 0.0
    %2833 = vmatpush2.msra.mxu0 0.0
    %2834 = vmatprep.subr.mxu0 0.0
    %2835 = vmatpush2.msra.mxu0 0.0
    %2836 = vmatprep.subr.mxu0 0.0
    %2837 = vmatpush2.msra.mxu0 0.0
    %2838 = vmatprep.subr.mxu0 0.0
    %2839 = vmatpush2.msra.mxu0 0.0
    %2840 = vmatprep.subr.mxu0 0.0
    %2841 = vmatpush2.msra.mxu0 0.0
    %2842 = vmatprep.subr.mxu0 0.0
    %2843 = vmatpush2.msra.mxu0 0.0
    %2844 = vmatprep.subr.mxu0 0.0
    %2845 = vmatpush2.msra.mxu0 0.0
    %2846 = vmatprep.subr.mxu0 0.0
    %2847 = vmatpush2.msra.mxu0 0.0
    %2848 = vmatprep.subr.mxu0 0.0
    %2849 = vmatpush2.msra.mxu0 0.0
    %2850 = vmatprep.subr.mxu0 0.0
    %2851 = vmatpush2.msra.mxu0 0.0
    %2852 = vmatprep.subr.mxu0 0.0
    %2853 = vmatpush2.msra.mxu0 0.0
    %2854 = vmatprep.mubr.f32.mxu0 0.0
    %2855 = vmatmul.mubr.f32.gmra.mxu0 %v2786
    %v2856 = vpop.f32.mrf.mxu0
    %v2857 = vadd.f32 %v2733, %v2856
    %v2858 = vpop.f32.mrf.mxu0
    %2859 = vmatprep.mubr.f32.mxu0 0.0
    %2860 = vmatmul.mubr.f32.gmra.mxu0 %v2788
    %v2861 = vpop.f32.mrf.mxu0
    %v2862 = vadd.f32 %v2733, %v2861
    %v2863 = vpop.f32.mrf.mxu0
    %2864 = vdwg.mxu0
    %v2865 = vmax.f32 %v2857, 0.0
    %v2866 = vmax.f32 %v2862, 0.0
    %2867 = vst.msk [vmem:[#allocation8] sm:$0xff] %vm177, %v2865
    %2868 = vst.msk [vmem:[#allocation8 + $0x8] sm:$0xff] %vm177, %v2866
    // Predicated region
    $region30: #{tpu_custom_call.1} parent=1 // pred_check
      _
    $region31: #{tpu_custom_call.1} parent=1 // pred_check_branch
      %2870 = sbr.rel (0) target = $region33
    $region32: #{tpu_custom_call.1} parent=1 // pred_region
      %s2872 = ssub.s32 256, 256
      %2873 = vsyncadd [#allocation4], %s2872
      %s2874 = sshll.u32 [#allocation8], 4
      %s2875 = int_to_ptr.vmem [resolvable:$true] %s2874
      %2880 = dma.vmem_to_hbm [thread:$0]  %s2875, 256, %s4, [#allocation4], 128, 128, 8
    $region33: #{tpu_custom_call.1} parent=1 // pred_fallthru
      _
    // Predicated region
    $region34: #{tpu_custom_call.1} parent=1 // pred_check
      _
    $region35: #{tpu_custom_call.1} parent=1 // pred_check_branch
      %2882 = sbr.rel (0) target = $region37
    $region36: #{tpu_custom_call.1} parent=1 // pred_region
      %2883 = dma.done [#allocation4], 256
    $region37: #{tpu_custom_call.1} parent=1 // pred_fallthru
      _
    %2884 = vsyncpa [#allocation3], 1
    %2885 = vsyncpa [#allocation6], 1
    %2886 = vsyncpa [#allocation4], 1

</llo_original>
